<compile_context>
chip_gen: v5e
topology: v5e:2x2
jax: 0.10.0
libtpu: 0.0.40
codegen_flags: <defaults>
</compile_context>

<pallas_src>
import functools

import jax
import jax.numpy as jnp
from jax.experimental import pallas as pl
from jax.experimental.pallas import tpu as pltpu


_VMEM_LIMIT_BYTES = 32 * 1024 * 1024   # safe on v5e/v6e (128 MiB) and v7x (64 MiB)
_TARGET_M_TILE = 512                   # 256-512 rows per review; multiple of 8/128-friendly


def _compiler_params():
    return pltpu.CompilerParams(
        dimension_semantics=("parallel",),      # M axis is embarrassingly parallel
        vmem_limit_bytes=_VMEM_LIMIT_BYTES,
    )


# ----------------------------------------------------------------------------
# Kernels
# ----------------------------------------------------------------------------
def _matmul_bias_act_kernel(x_ref, w_ref, b_ref, o_ref, *, apply_relu: bool):
    """o = relu?(x @ w + b); bf16 operands, f32 MXU accumulation, f32 epilogue."""
    acc = jnp.dot(x_ref[...], w_ref[...], preferred_element_type=jnp.float32)
    acc = acc + b_ref[...]
    if apply_relu:
        acc = jnp.maximum(acc, 0.0)
    o_ref[...] = acc.astype(o_ref.dtype)


def _fc_fused_kernel(x_ref, w1_ref, b1_ref, w2_ref, b2_ref, o_ref):
    """out = (relu(x @ w1 + b1)) @ w2 + b2, fully fused (fc1 act stays in VMEM)."""
    h = jnp.dot(x_ref[...], w1_ref[...], preferred_element_type=jnp.float32)
    h = jnp.maximum(h + b1_ref[...], 0.0)
    y = jnp.dot(h.astype(w2_ref.dtype), w2_ref[...],
                preferred_element_type=jnp.float32)
    o_ref[...] = (y + b2_ref[...]).astype(o_ref.dtype)


def _maxpool_2x2_s1_kernel(x_ref, o_ref):
    """2x2 max-pool, stride 1, NHWC block [bt, H, W, C] -> [bt, H-1, W-1, C]."""
    x = x_ref[...]
    o_ref[...] = jnp.maximum(
        jnp.maximum(x[:, :-1, :-1, :], x[:, :-1, 1:, :]),
        jnp.maximum(x[:, 1:, :-1, :], x[:, 1:, 1:, :]),
    )


# ----------------------------------------------------------------------------
# Pallas wrappers
# ----------------------------------------------------------------------------
def matmul_bias_act(x, w, b, *, relu, out_dtype):
    """x:[M,K] bf16 @ w:[K,N] bf16 + b:[1,N] f32, tiled over M with a parallel grid."""
    M, K = x.shape
    Kw, N = w.shape
    assert K == Kw and b.shape == (1, N)
    tm = M if M <= _TARGET_M_TILE else _TARGET_M_TILE
    grid = (pl.cdiv(M, tm),)
    kernel = functools.partial(_matmul_bias_act_kernel, apply_relu=relu)
    return pl.pallas_call(
        kernel,
        out_shape=jax.ShapeDtypeStruct((M, N), out_dtype),
        grid=grid,
        in_specs=[
            pl.BlockSpec((tm, K), lambda i: (i, 0)),   # M-tile of patches
            pl.BlockSpec((K, N), lambda i: (0, 0)),    # whole weight (tiny, not re-fetched)
            pl.BlockSpec((1, N), lambda i: (0, 0)),    # bias
        ],
        out_specs=pl.BlockSpec((tm, N), lambda i: (i, 0)),
        compiler_params=_compiler_params(),
    )(x, w, b)


def fc_fused(x, w1, b1, w2, b2, *, out_dtype=jnp.float32):
    """Fused fc1(ReLU)+fc2: x:[M,K1] bf16 -> [M,N] f32, one kernel launch."""
    M, K1 = x.shape
    _, H = w1.shape
    _, N = w2.shape
    tm = M if M <= _TARGET_M_TILE else _TARGET_M_TILE
    grid = (pl.cdiv(M, tm),)
    return pl.pallas_call(
        _fc_fused_kernel,
        out_shape=jax.ShapeDtypeStruct((M, N), out_dtype),
        grid=grid,
        in_specs=[
            pl.BlockSpec((tm, K1), lambda i: (i, 0)),
            pl.BlockSpec((K1, H), lambda i: (0, 0)),
            pl.BlockSpec((1, H), lambda i: (0, 0)),
            pl.BlockSpec((H, N), lambda i: (0, 0)),
            pl.BlockSpec((1, N), lambda i: (0, 0)),
        ],
        out_specs=pl.BlockSpec((tm, N), lambda i: (i, 0)),
        compiler_params=_compiler_params(),
    )(x, w1, b1, w2, b2)


def maxpool_2x2_s1(x):
    """F.max_pool2d(x, 2, 1) on NHWC input, tiled over batch."""
    B, H, W, C = x.shape
    bytes_per_sample = H * W * C * x.dtype.itemsize
    bt = min(B, max(1, (2 * 1024 * 1024) // bytes_per_sample))
    while B % bt:          # keep bt a divisor of B so blocks tile exactly
        bt -= 1
    grid = (B // bt,)
    return pl.pallas_call(
        _maxpool_2x2_s1_kernel,
        out_shape=jax.ShapeDtypeStruct((B, H - 1, W - 1, C), x.dtype),
        grid=grid,
        in_specs=[pl.BlockSpec((bt, H, W, C), lambda i: (i, 0, 0, 0))],
        out_specs=pl.BlockSpec((bt, H - 1, W - 1, C), lambda i: (i, 0, 0, 0)),
        compiler_params=_compiler_params(),
    )(x)


# ----------------------------------------------------------------------------
# Conv = im2col (bf16, NHWC, no transposes) + fused matmul/bias/ReLU kernel
# ----------------------------------------------------------------------------
def conv2d_relu(x, w_packed, b, *, ksize, stride, padding):
    """x:[B,H,W,Cin] bf16 NHWC, w_packed:[KH*KW*Cin,Cout] bf16, b:[1,Cout] f32."""
    B, H, W, Cin = x.shape
    K, Cout = w_packed.shape
    KH = KW = ksize
    assert K == KH * KW * Cin
    if padding:
        x = jnp.pad(x, ((0, 0), (padding, padding), (padding, padding), (0, 0)))
    Hp, Wp = H + 2 * padding, W + 2 * padding
    OH = (Hp - KH) // stride + 1
    OW = (Wp - KW) // stride + 1

    # im2col in (kh, kw, ci) order to match the packed weight.  Pure strided slicing,
    # stack, and a row-major collapse (no transposes) in bf16.
    # TODO(synk): build patches inside the kernel from a VMEM-resident input window to
    # remove the KH*KW duplication of the activation in HBM entirely.
    slices = [
        x[:, kh:kh + stride * OH:stride, kw:kw + stride * OW:stride, :]
        for kh in range(KH) for kw in range(KW)
    ]
    patches = jnp.stack(slices, axis=3).reshape(B * OH * OW, KH * KW * Cin)

    y = matmul_bias_act(patches, w_packed, b, relu=True, out_dtype=jnp.bfloat16)
    return y.reshape(B, OH, OW, Cout)          # free row-major reshape to NHWC


# ----------------------------------------------------------------------------
# Full forward pass (matches PyTorch SampleConvNet semantics)
# ----------------------------------------------------------------------------
def sample_convnet_forward(x_nchw, params):
    # one-time NCHW -> NHWC; C=1 so this is essentially free
    x = jnp.transpose(x_nchw, (0, 2, 3, 1)).astype(jnp.bfloat16)
    x = conv2d_relu(x, params["conv1_w"], params["conv1_b"],
                    ksize=8, stride=2, padding=3)          # [B,14,14,16]
    x = maxpool_2x2_s1(x)                                   # [B,13,13,16]
    x = conv2d_relu(x, params["conv2_w"], params["conv2_b"],
                    ksize=4, stride=2, padding=0)          # [B,5,5,32]
    x = maxpool_2x2_s1(x)                                   # [B,4,4,32]
    B = x.shape[0]
    x = x.reshape(B, 4 * 4 * 32)   # NHWC flatten; fc1_w rows are pre-permuted to match
    return fc_fused(x, params["fc1_w"], params["fc1_b"],
                    params["fc2_w"], params["fc2_b"])       # [B,10] f32


# ----------------------------------------------------------------------------
# Parameters: torch-layout init, packed ONCE outside jit (no per-call reshapes)
# ----------------------------------------------------------------------------
def init_torch_layout_params(key):
    ks = jax.random.split(key, 8)
    f32 = jnp.float32
    return {
        "conv1_w": 0.05 * jax.random.normal(ks[0], (16, 1, 8, 8), f32),
        "conv1_b": 0.05 * jax.random.normal(ks[1], (16,), f32),
        "conv2_w": 0.05 * jax.random.normal(ks[2], (32, 16, 4, 4), f32),
        "conv2_b": 0.05 * jax.random.normal(ks[3], (32,), f32),
        "fc1_w":   0.05 * jax.random.normal(ks[4], (32, 512), f32),   # torch [out, in]
        "fc1_b":   0.05 * jax.random.normal(ks[5], (32,), f32),
        "fc2_w":   0.05 * jax.random.normal(ks[6], (10, 32), f32),
        "fc2_b":   0.05 * jax.random.normal(ks[7], (10,), f32),
    }


def pack_params(raw):
    def pack_conv(w):  # [Cout,Cin,KH,KW] -> [KH*KW*Cin, Cout] (matches im2col order)
        cout, cin, kh, kw = w.shape
        return (jnp.transpose(w, (2, 3, 1, 0))
                .reshape(kh * kw * cin, cout).astype(jnp.bfloat16))

    # fc1: torch flattens NCHW (index c*16 + h*4 + w); we flatten NHWC ((h*4+w)*32 + c),
    # so permute the weight rows once here instead of transposing activations per call.
    fc1_packed = (raw["fc1_w"].reshape(32, 32, 4, 4)   # [out, c, h, w]
                  .transpose(2, 3, 1, 0)               # [h, w, c, out]
                  .reshape(512, 32).astype(jnp.bfloat16))
    return {
        "conv1_w": pack_conv(raw["conv1_w"]),
        "conv1_b": raw["conv1_b"].reshape(1, -1).astype(jnp.float32),
        "conv2_w": pack_conv(raw["conv2_w"]),
        "conv2_b": raw["conv2_b"].reshape(1, -1).astype(jnp.float32),
        "fc1_w": fc1_packed,
        "fc1_b": raw["fc1_b"].reshape(1, -1).astype(jnp.float32),
        "fc2_w": raw["fc2_w"].T.astype(jnp.bfloat16),
        "fc2_b": raw["fc2_b"].reshape(1, -1).astype(jnp.float32),
    }


if __name__ == "__main__":
    key = jax.random.PRNGKey(0)
    pkey, xkey = jax.random.split(key)
    params = jax.tree_util.tree_map(jax.block_until_ready,
                                    pack_params(init_torch_layout_params(pkey)))
    # MNIST-shaped input (28x28 is required by the 32*4*4 flatten).
    x = jax.random.normal(xkey, (2, 1, 28, 28), jnp.float32)

    out = jax.jit(sample_convnet_forward)(x, params)
    out = jax.block_until_ready(out)
    assert out.shape == (2, 10), out.shape
    assert out.dtype == jnp.float32
    print("KERNEL_OK")
</pallas_src>

<mosaic_0001>
module attributes {stable_mosaic.version = 11 : i64} {
  func.func @_matmul_bias_act_kernel(%arg0: i32, %arg1: memref<392x64xbf16, #tpu.memory_space<vmem>>, %arg2: memref<64x16xbf16, #tpu.memory_space<vmem>>, %arg3: memref<1x16xf32, #tpu.memory_space<vmem>>, %arg4: memref<392x16xbf16, #tpu.memory_space<vmem>>) attributes {dimension_semantics = [#tpu.dimension_semantics<parallel>], iteration_bounds = array<i64: 1>, scalar_prefetch = 0 : i64, scratch_operands = 0 : i64, tpu.core_type = #tpu.core_type<tc>, window_params = [{transform_indices = @transform_0, window_bounds = array<i64: 392, 64>}, {pipeline_mode = #tpu.pipeline_mode<synchronous>, transform_indices = @transform_1, window_bounds = array<i64: 64, 16>}, {pipeline_mode = #tpu.pipeline_mode<synchronous>, transform_indices = @transform_2, window_bounds = array<i64: 1, 16>}, {transform_indices = @transform_3, window_bounds = array<i64: 392, 16>}]} {
    %c0 = arith.constant 0 : index
    %c0_0 = arith.constant 0 : index
    %0 = vector.load %arg1[%c0, %c0_0] : memref<392x64xbf16, #tpu.memory_space<vmem>>, vector<392x64xbf16>
    %c0_1 = arith.constant 0 : index
    %c0_2 = arith.constant 0 : index
    %1 = vector.load %arg2[%c0_1, %c0_2] : memref<64x16xbf16, #tpu.memory_space<vmem>>, vector<64x16xbf16>
    %cst = arith.constant dense<0.000000e+00> : vector<392x16xf32>
    %2 = tpu.matmul %0, %1, %cst {dimension_numbers = #tpu.dot_dimension_numbers<[1], [0], [0], [1], [0, 0, 1, 1], [], []>} : vector<392x64xbf16>, vector<64x16xbf16>, vector<392x16xf32> -> vector<392x16xf32>
    %c0_3 = arith.constant 0 : index
    %c0_4 = arith.constant 0 : index
    %3 = vector.load %arg3[%c0_3, %c0_4] : memref<1x16xf32, #tpu.memory_space<vmem>>, vector<1x16xf32>
    %4 = vector.broadcast %3 : vector<1x16xf32> to vector<392x16xf32>
    %5 = arith.addf %2, %4 : vector<392x16xf32>
    %cst_5 = arith.constant 0.000000e+00 : f32
    %6 = vector.broadcast %cst_5 : f32 to vector<392x16xf32>
    %7 = arith.maximumf %5, %6 : vector<392x16xf32>
    %8 = arith.truncf %7 : vector<392x16xf32> to vector<392x16xbf16>
    %c0_6 = arith.constant 0 : index
    %c0_7 = arith.constant 0 : index
    %9 = vector.load %arg4[%c0_6, %c0_7] : memref<392x16xbf16, #tpu.memory_space<vmem>>, vector<392x16xbf16>
    tpu.vector_store %arg4[%c0_6, %c0_7], %8 {strides = array<i32>} : memref<392x16xbf16, #tpu.memory_space<vmem>>, vector<392x16xbf16>,
    return
  }
  func.func @transform_0(%arg0: i32) -> (i32, i32) {
    %c0_i32 = arith.constant 0 : i32
    %c0_i32_0 = arith.constant 0 : i32
    return %arg0, %c0_i32 : i32, i32
  }
  func.func @transform_1(%arg0: i32) -> (i32, i32) {
    %c0_i32 = arith.constant 0 : i32
    %c0_i32_0 = arith.constant 0 : i32
    %c0_i32_1 = arith.constant 0 : i32
    return %c0_i32, %c0_i32_0 : i32, i32
  }
  func.func @transform_2(%arg0: i32) -> (i32, i32) {
    %c0_i32 = arith.constant 0 : i32
    %c0_i32_0 = arith.constant 0 : i32
    %c0_i32_1 = arith.constant 0 : i32
    return %c0_i32, %c0_i32_0 : i32, i32
  }
  func.func @transform_3(%arg0: i32) -> (i32, i32) {
    %c0_i32 = arith.constant 0 : i32
    %c0_i32_0 = arith.constant 0 : i32
    return %arg0, %c0_i32 : i32, i32
  }
}

module attributes {stable_mosaic.version = 11 : i64} {
  func.func @_maxpool_2x2_s1_kernel(%arg0: i32, %arg1: memref<2x14x14x16xbf16, #tpu.memory_space<vmem>>, %arg2: memref<2x13x13x16xbf16, #tpu.memory_space<vmem>>) attributes {dimension_semantics = [#tpu.dimension_semantics<parallel>], iteration_bounds = array<i64: 1>, scalar_prefetch = 0 : i64, scratch_operands = 0 : i64, tpu.core_type = #tpu.core_type<tc>, window_params = [{transform_indices = @transform_0, window_bounds = array<i64: 2, 14, 14, 16>}, {transform_indices = @transform_1, window_bounds = array<i64: 2, 13, 13, 16>}]} {
    %c0 = arith.constant 0 : index
    %c0_0 = arith.constant 0 : index
    %c0_1 = arith.constant 0 : index
    %c0_2 = arith.constant 0 : index
    %0 = vector.load %arg1[%c0, %c0_0, %c0_1, %c0_2] : memref<2x14x14x16xbf16, #tpu.memory_space<vmem>>, vector<2x14x14x16xbf16>
    %1 = vector.extract_strided_slice %0 {offsets = [0, 0, 0, 0], sizes = [2, 13, 13, 16], strides = [1, 1, 1, 1]} : vector<2x14x14x16xbf16> to vector<2x13x13x16xbf16>
    %2 = vector.extract_strided_slice %0 {offsets = [0, 0, 1, 0], sizes = [2, 13, 13, 16], strides = [1, 1, 1, 1]} : vector<2x14x14x16xbf16> to vector<2x13x13x16xbf16>
    %3 = arith.maximumf %1, %2 : vector<2x13x13x16xbf16>
    %4 = vector.extract_strided_slice %0 {offsets = [0, 1, 0, 0], sizes = [2, 13, 13, 16], strides = [1, 1, 1, 1]} : vector<2x14x14x16xbf16> to vector<2x13x13x16xbf16>
    %5 = vector.extract_strided_slice %0 {offsets = [0, 1, 1, 0], sizes = [2, 13, 13, 16], strides = [1, 1, 1, 1]} : vector<2x14x14x16xbf16> to vector<2x13x13x16xbf16>
    %6 = arith.maximumf %4, %5 : vector<2x13x13x16xbf16>
    %7 = arith.maximumf %3, %6 : vector<2x13x13x16xbf16>
    %c0_3 = arith.constant 0 : index
    %c0_4 = arith.constant 0 : index
    %c0_5 = arith.constant 0 : index
    %c0_6 = arith.constant 0 : index
    %8 = vector.load %arg2[%c0_3, %c0_4, %c0_5, %c0_6] : memref<2x13x13x16xbf16, #tpu.memory_space<vmem>>, vector<2x13x13x16xbf16>
    tpu.vector_store %arg2[%c0_3, %c0_4, %c0_5, %c0_6], %7 {strides = array<i32>} : memref<2x13x13x16xbf16, #tpu.memory_space<vmem>>, vector<2x13x13x16xbf16>,
    return
  }
  func.func @transform_0(%arg0: i32) -> (i32, i32, i32, i32) {
    %c0_i32 = arith.constant 0 : i32
    %c0_i32_0 = arith.constant 0 : i32
    %c0_i32_1 = arith.constant 0 : i32
    %c0_i32_2 = arith.constant 0 : i32
    return %arg0, %c0_i32, %c0_i32_0, %c0_i32_1 : i32, i32, i32, i32
  }
  func.func @transform_1(%arg0: i32) -> (i32, i32, i32, i32) {
    %c0_i32 = arith.constant 0 : i32
    %c0_i32_0 = arith.constant 0 : i32
    %c0_i32_1 = arith.constant 0 : i32
    %c0_i32_2 = arith.constant 0 : i32
    return %arg0, %c0_i32, %c0_i32_0, %c0_i32_1 : i32, i32, i32, i32
  }
}

module attributes {stable_mosaic.version = 11 : i64} {
  func.func @_matmul_bias_act_kernel(%arg0: i32, %arg1: memref<50x256xbf16, #tpu.memory_space<vmem>>, %arg2: memref<256x32xbf16, #tpu.memory_space<vmem>>, %arg3: memref<1x32xf32, #tpu.memory_space<vmem>>, %arg4: memref<50x32xbf16, #tpu.memory_space<vmem>>) attributes {dimension_semantics = [#tpu.dimension_semantics<parallel>], iteration_bounds = array<i64: 1>, scalar_prefetch = 0 : i64, scratch_operands = 0 : i64, tpu.core_type = #tpu.core_type<tc>, window_params = [{transform_indices = @transform_0, window_bounds = array<i64: 50, 256>}, {pipeline_mode = #tpu.pipeline_mode<synchronous>, transform_indices = @transform_1, window_bounds = array<i64: 256, 32>}, {pipeline_mode = #tpu.pipeline_mode<synchronous>, transform_indices = @transform_2, window_bounds = array<i64: 1, 32>}, {transform_indices = @transform_3, window_bounds = array<i64: 50, 32>}]} {
    %c0 = arith.constant 0 : index
    %c0_0 = arith.constant 0 : index
    %0 = vector.load %arg1[%c0, %c0_0] : memref<50x256xbf16, #tpu.memory_space<vmem>>, vector<50x256xbf16>
    %c0_1 = arith.constant 0 : index
    %c0_2 = arith.constant 0 : index
    %1 = vector.load %arg2[%c0_1, %c0_2] : memref<256x32xbf16, #tpu.memory_space<vmem>>, vector<256x32xbf16>
    %cst = arith.constant dense<0.000000e+00> : vector<50x32xf32>
    %2 = tpu.matmul %0, %1, %cst {dimension_numbers = #tpu.dot_dimension_numbers<[1], [0], [0], [1], [0, 0, 1, 1], [], []>} : vector<50x256xbf16>, vector<256x32xbf16>, vector<50x32xf32> -> vector<50x32xf32>
    %c0_3 = arith.constant 0 : index
    %c0_4 = arith.constant 0 : index
    %3 = vector.load %arg3[%c0_3, %c0_4] : memref<1x32xf32, #tpu.memory_space<vmem>>, vector<1x32xf32>
    %4 = vector.broadcast %3 : vector<1x32xf32> to vector<50x32xf32>
    %5 = arith.addf %2, %4 : vector<50x32xf32>
    %cst_5 = arith.constant 0.000000e+00 : f32
    %6 = vector.broadcast %cst_5 : f32 to vector<50x32xf32>
    %7 = arith.maximumf %5, %6 : vector<50x32xf32>
    %8 = arith.truncf %7 : vector<50x32xf32> to vector<50x32xbf16>
    %c0_6 = arith.constant 0 : index
    %c0_7 = arith.constant 0 : index
    %9 = vector.load %arg4[%c0_6, %c0_7] : memref<50x32xbf16, #tpu.memory_space<vmem>>, vector<50x32xbf16>
    tpu.vector_store %arg4[%c0_6, %c0_7], %8 {strides = array<i32>} : memref<50x32xbf16, #tpu.memory_space<vmem>>, vector<50x32xbf16>,
    return
  }
  func.func @transform_0(%arg0: i32) -> (i32, i32) {
    %c0_i32 = arith.constant 0 : i32
    %c0_i32_0 = arith.constant 0 : i32
    return %arg0, %c0_i32 : i32, i32
  }
  func.func @transform_1(%arg0: i32) -> (i32, i32) {
    %c0_i32 = arith.constant 0 : i32
    %c0_i32_0 = arith.constant 0 : i32
    %c0_i32_1 = arith.constant 0 : i32
    return %c0_i32, %c0_i32_0 : i32, i32
  }
  func.func @transform_2(%arg0: i32) -> (i32, i32) {
    %c0_i32 = arith.constant 0 : i32
    %c0_i32_0 = arith.constant 0 : i32
    %c0_i32_1 = arith.constant 0 : i32
    return %c0_i32, %c0_i32_0 : i32, i32
  }
  func.func @transform_3(%arg0: i32) -> (i32, i32) {
    %c0_i32 = arith.constant 0 : i32
    %c0_i32_0 = arith.constant 0 : i32
    return %arg0, %c0_i32 : i32, i32
  }
}

module attributes {stable_mosaic.version = 11 : i64} {
  func.func @_maxpool_2x2_s1_kernel(%arg0: i32, %arg1: memref<2x5x5x32xbf16, #tpu.memory_space<vmem>>, %arg2: memref<2x4x4x32xbf16, #tpu.memory_space<vmem>>) attributes {dimension_semantics = [#tpu.dimension_semantics<parallel>], iteration_bounds = array<i64: 1>, scalar_prefetch = 0 : i64, scratch_operands = 0 : i64, tpu.core_type = #tpu.core_type<tc>, window_params = [{transform_indices = @transform_0, window_bounds = array<i64: 2, 5, 5, 32>}, {transform_indices = @transform_1, window_bounds = array<i64: 2, 4, 4, 32>}]} {
    %c0 = arith.constant 0 : index
    %c0_0 = arith.constant 0 : index
    %c0_1 = arith.constant 0 : index
    %c0_2 = arith.constant 0 : index
    %0 = vector.load %arg1[%c0, %c0_0, %c0_1, %c0_2] : memref<2x5x5x32xbf16, #tpu.memory_space<vmem>>, vector<2x5x5x32xbf16>
    %1 = vector.extract_strided_slice %0 {offsets = [0, 0, 0, 0], sizes = [2, 4, 4, 32], strides = [1, 1, 1, 1]} : vector<2x5x5x32xbf16> to vector<2x4x4x32xbf16>
    %2 = vector.extract_strided_slice %0 {offsets = [0, 0, 1, 0], sizes = [2, 4, 4, 32], strides = [1, 1, 1, 1]} : vector<2x5x5x32xbf16> to vector<2x4x4x32xbf16>
    %3 = arith.maximumf %1, %2 : vector<2x4x4x32xbf16>
    %4 = vector.extract_strided_slice %0 {offsets = [0, 1, 0, 0], sizes = [2, 4, 4, 32], strides = [1, 1, 1, 1]} : vector<2x5x5x32xbf16> to vector<2x4x4x32xbf16>
    %5 = vector.extract_strided_slice %0 {offsets = [0, 1, 1, 0], sizes = [2, 4, 4, 32], strides = [1, 1, 1, 1]} : vector<2x5x5x32xbf16> to vector<2x4x4x32xbf16>
    %6 = arith.maximumf %4, %5 : vector<2x4x4x32xbf16>
    %7 = arith.maximumf %3, %6 : vector<2x4x4x32xbf16>
    %c0_3 = arith.constant 0 : index
    %c0_4 = arith.constant 0 : index
    %c0_5 = arith.constant 0 : index
    %c0_6 = arith.constant 0 : index
    %8 = vector.load %arg2[%c0_3, %c0_4, %c0_5, %c0_6] : memref<2x4x4x32xbf16, #tpu.memory_space<vmem>>, vector<2x4x4x32xbf16>
    tpu.vector_store %arg2[%c0_3, %c0_4, %c0_5, %c0_6], %7 {strides = array<i32>} : memref<2x4x4x32xbf16, #tpu.memory_space<vmem>>, vector<2x4x4x32xbf16>,
    return
  }
  func.func @transform_0(%arg0: i32) -> (i32, i32, i32, i32) {
    %c0_i32 = arith.constant 0 : i32
    %c0_i32_0 = arith.constant 0 : i32
    %c0_i32_1 = arith.constant 0 : i32
    %c0_i32_2 = arith.constant 0 : i32
    return %arg0, %c0_i32, %c0_i32_0, %c0_i32_1 : i32, i32, i32, i32
  }
  func.func @transform_1(%arg0: i32) -> (i32, i32, i32, i32) {
    %c0_i32 = arith.constant 0 : i32
    %c0_i32_0 = arith.constant 0 : i32
    %c0_i32_1 = arith.constant 0 : i32
    %c0_i32_2 = arith.constant 0 : i32
    return %arg0, %c0_i32, %c0_i32_0, %c0_i32_1 : i32, i32, i32, i32
  }
}

module attributes {stable_mosaic.version = 11 : i64} {
  func.func @_fc_fused_kernel(%arg0: i32, %arg1: memref<2x512xbf16, #tpu.memory_space<vmem>>, %arg2: memref<512x32xbf16, #tpu.memory_space<vmem>>, %arg3: memref<1x32xf32, #tpu.memory_space<vmem>>, %arg4: memref<32x10xbf16, #tpu.memory_space<vmem>>, %arg5: memref<1x10xf32, #tpu.memory_space<vmem>>, %arg6: memref<2x10xf32, #tpu.memory_space<vmem>>) attributes {dimension_semantics = [#tpu.dimension_semantics<parallel>], iteration_bounds = array<i64: 1>, scalar_prefetch = 0 : i64, scratch_operands = 0 : i64, tpu.core_type = #tpu.core_type<tc>, window_params = [{transform_indices = @transform_0, window_bounds = array<i64: 2, 512>}, {pipeline_mode = #tpu.pipeline_mode<synchronous>, transform_indices = @transform_1, window_bounds = array<i64: 512, 32>}, {pipeline_mode = #tpu.pipeline_mode<synchronous>, transform_indices = @transform_2, window_bounds = array<i64: 1, 32>}, {pipeline_mode = #tpu.pipeline_mode<synchronous>, transform_indices = @transform_3, window_bounds = array<i64: 32, 10>}, {pipeline_mode = #tpu.pipeline_mode<synchronous>, transform_indices = @transform_4, window_bounds = array<i64: 1, 10>}, {transform_indices = @transform_5, window_bounds = array<i64: 2, 10>}]} {
    %c0 = arith.constant 0 : index
    %c0_0 = arith.constant 0 : index
    %0 = vector.load %arg1[%c0, %c0_0] : memref<2x512xbf16, #tpu.memory_space<vmem>>, vector<2x512xbf16>
    %c0_1 = arith.constant 0 : index
    %c0_2 = arith.constant 0 : index
    %1 = vector.load %arg2[%c0_1, %c0_2] : memref<512x32xbf16, #tpu.memory_space<vmem>>, vector<512x32xbf16>
    %cst = arith.constant dense<0.000000e+00> : vector<2x32xf32>
    %2 = tpu.matmul %0, %1, %cst {dimension_numbers = #tpu.dot_dimension_numbers<[1], [0], [0], [1], [0, 0, 1, 1], [], []>} : vector<2x512xbf16>, vector<512x32xbf16>, vector<2x32xf32> -> vector<2x32xf32>
    %c0_3 = arith.constant 0 : index
    %c0_4 = arith.constant 0 : index
    %3 = vector.load %arg3[%c0_3, %c0_4] : memref<1x32xf32, #tpu.memory_space<vmem>>, vector<1x32xf32>
    %4 = vector.broadcast %3 : vector<1x32xf32> to vector<2x32xf32>
    %5 = arith.addf %2, %4 : vector<2x32xf32>
    %cst_5 = arith.constant 0.000000e+00 : f32
    %6 = vector.broadcast %cst_5 : f32 to vector<2x32xf32>
    %7 = arith.maximumf %5, %6 : vector<2x32xf32>
    %8 = arith.truncf %7 : vector<2x32xf32> to vector<2x32xbf16>
    %c0_6 = arith.constant 0 : index
    %c0_7 = arith.constant 0 : index
    %9 = vector.load %arg4[%c0_6, %c0_7] : memref<32x10xbf16, #tpu.memory_space<vmem>>, vector<32x10xbf16>
    %cst_8 = arith.constant dense<0.000000e+00> : vector<2x10xf32>
    %10 = tpu.matmul %8, %9, %cst_8 {dimension_numbers = #tpu.dot_dimension_numbers<[1], [0], [0], [1], [0, 0, 1, 1], [], []>} : vector<2x32xbf16>, vector<32x10xbf16>, vector<2x10xf32> -> vector<2x10xf32>
    %c0_9 = arith.constant 0 : index
    %c0_10 = arith.constant 0 : index
    %11 = vector.load %arg5[%c0_9, %c0_10] : memref<1x10xf32, #tpu.memory_space<vmem>>, vector<1x10xf32>
    %12 = vector.broadcast %11 : vector<1x10xf32> to vector<2x10xf32>
    %13 = arith.addf %10, %12 : vector<2x10xf32>
    %c0_11 = arith.constant 0 : index
    %c0_12 = arith.constant 0 : index
    %14 = vector.load %arg6[%c0_11, %c0_12] : memref<2x10xf32, #tpu.memory_space<vmem>>, vector<2x10xf32>
    tpu.vector_store %arg6[%c0_11, %c0_12], %13 {strides = array<i32>} : memref<2x10xf32, #tpu.memory_space<vmem>>, vector<2x10xf32>,
    return
  }
  func.func @transform_0(%arg0: i32) -> (i32, i32) {
    %c0_i32 = arith.constant 0 : i32
    %c0_i32_0 = arith.constant 0 : i32
    return %arg0, %c0_i32 : i32, i32
  }
  func.func @transform_1(%arg0: i32) -> (i32, i32) {
    %c0_i32 = arith.constant 0 : i32
    %c0_i32_0 = arith.constant 0 : i32
    %c0_i32_1 = arith.constant 0 : i32
    return %c0_i32, %c0_i32_0 : i32, i32
  }
  func.func @transform_2(%arg0: i32) -> (i32, i32) {
    %c0_i32 = arith.constant 0 : i32
    %c0_i32_0 = arith.constant 0 : i32
    %c0_i32_1 = arith.constant 0 : i32
    return %c0_i32, %c0_i32_0 : i32, i32
  }
  func.func @transform_3(%arg0: i32) -> (i32, i32) {
    %c0_i32 = arith.constant 0 : i32
    %c0_i32_0 = arith.constant 0 : i32
    %c0_i32_1 = arith.constant 0 : i32
    return %c0_i32, %c0_i32_0 : i32, i32
  }
  func.func @transform_4(%arg0: i32) -> (i32, i32) {
    %c0_i32 = arith.constant 0 : i32
    %c0_i32_0 = arith.constant 0 : i32
    %c0_i32_1 = arith.constant 0 : i32
    return %c0_i32, %c0_i32_0 : i32, i32
  }
  func.func @transform_5(%arg0: i32) -> (i32, i32) {
    %c0_i32 = arith.constant 0 : i32
    %c0_i32_0 = arith.constant 0 : i32
    return %arg0, %c0_i32 : i32, i32
  }
}

</mosaic_0001>

<llo_original>
// kernel: sample_convnet_forward.5
$region0: #{sample_convnet_forward.5}
  #allocation0 [shape = 'u32[]', space=smem, size = 0x4, offset = 0x4, fixed_abs, tag = 'smem constant byte address 0x4 - core index']
  #allocation1 [shape = 'u32[72,128]{1,0:T(1,128)}', space=vmem, size = 0x9000, scoped, tag = 'internal scratch']
  %s0 = inlined_call_operand.vmem [shape: bf16[392,64], index: 0, kind: input, shape index: {}]
  %s1 = inlined_call_operand.vmem [shape: bf16[64,16], index: 1, kind: input, shape index: {}]
  %s2 = inlined_call_operand.vmem [shape: f32[1,16], index: 2, kind: input, shape index: {}]
  %s3 = inlined_call_operand.vmem [shape: bf16[392,16], index: 3, kind: output, shape index: {}]
  %s4 = sld [smem:[#allocation0]]
  $region22: #{sample_convnet_forward.5} parent=0
    _
  %s6 = ssub.s32 1, %s4
  %s7 = scalar_select 0, %s6, %s4
  // Predicated region
  $region2: #{sample_convnet_forward.5} parent=0 // pred_check
    _
  $region3: #{sample_convnet_forward.5} parent=0 // pred_check_branch
    %9 = sbr.rel (0) target = $region5
  $region4: #{sample_convnet_forward.5} parent=0 // pred_region
    _
  $region5: #{sample_convnet_forward.5} parent=0 // pred_fallthru
    _
  // Predicated region
  $region6: #{sample_convnet_forward.5} parent=0 // pred_check
    _
  $region7: #{sample_convnet_forward.5} parent=0 // pred_check_branch
    %11 = sbr.rel (0) target = $region9
  $region8: #{sample_convnet_forward.5} parent=0 // pred_region
    _
  $region9: #{sample_convnet_forward.5} parent=0 // pred_fallthru
    _
  // Predicated region
  $region10: #{sample_convnet_forward.5} parent=0 // pred_check
    _
  $region11: #{sample_convnet_forward.5} parent=0 // pred_check_branch
    %13 = sbr.rel (0) target = $region13
  $region12: #{sample_convnet_forward.5} parent=0 // pred_region
    _
  $region13: #{sample_convnet_forward.5} parent=0 // pred_fallthru
    _
  %v15 = vld [vmem:[%s0] sm:$0xf]
  %v16 = vld [vmem:[%s0 + $0x4] sm:$0xf]
  %v17 = vld [vmem:[%s0 + $0x8] sm:$0xf]
  %v18 = vld [vmem:[%s0 + $0xc] sm:$0xf]
  %v19 = vld [vmem:[%s0 + $0x10] sm:$0xf]
  %v20 = vld [vmem:[%s0 + $0x14] sm:$0xf]
  %v21 = vld [vmem:[%s0 + $0x18] sm:$0xf]
  %v22 = vld [vmem:[%s0 + $0x1c] sm:$0xf]
  %v23 = vld [vmem:[%s0 + $0x20] sm:$0xf]
  %v24 = vld [vmem:[%s0 + $0x24] sm:$0xf]
  %v25 = vld [vmem:[%s0 + $0x28] sm:$0xf]
  %v26 = vld [vmem:[%s0 + $0x2c] sm:$0xf]
  %v27 = vld [vmem:[%s0 + $0x30] sm:$0xf]
  %v28 = vld [vmem:[%s0 + $0x34] sm:$0xf]
  %v29 = vld [vmem:[%s0 + $0x38] sm:$0xf]
  %v30 = vld [vmem:[%s0 + $0x3c] sm:$0xf]
  %v31 = vld [vmem:[%s0 + $0x40] sm:$0xf]
  %v32 = vld [vmem:[%s0 + $0x44] sm:$0xf]
  %v33 = vld [vmem:[%s0 + $0x48] sm:$0xf]
  %v34 = vld [vmem:[%s0 + $0x4c] sm:$0xf]
  %v35 = vld [vmem:[%s0 + $0x50] sm:$0xf]
  %v36 = vld [vmem:[%s0 + $0x54] sm:$0xf]
  %v37 = vld [vmem:[%s0 + $0x58] sm:$0xf]
  %v38 = vld [vmem:[%s0 + $0x5c] sm:$0xf]
  %v39 = vld [vmem:[%s0 + $0x60] sm:$0xf]
  %v40 = vld [vmem:[%s0 + $0x64] sm:$0xf]
  %v41 = vld [vmem:[%s0 + $0x68] sm:$0xf]
  %v42 = vld [vmem:[%s0 + $0x6c] sm:$0xf]
  %v43 = vld [vmem:[%s0 + $0x70] sm:$0xf]
  %v44 = vld [vmem:[%s0 + $0x74] sm:$0xf]
  %v45 = vld [vmem:[%s0 + $0x78] sm:$0xf]
  %v46 = vld [vmem:[%s0 + $0x7c] sm:$0xf]
  %v47 = vld [vmem:[%s0 + $0x80] sm:$0xf]
  %v48 = vld [vmem:[%s0 + $0x84] sm:$0xf]
  %v49 = vld [vmem:[%s0 + $0x88] sm:$0xf]
  %v50 = vld [vmem:[%s0 + $0x8c] sm:$0xf]
  %v51 = vld [vmem:[%s0 + $0x90] sm:$0xf]
  %v52 = vld [vmem:[%s0 + $0x94] sm:$0xf]
  %v53 = vld [vmem:[%s0 + $0x98] sm:$0xf]
  %v54 = vld [vmem:[%s0 + $0x9c] sm:$0xf]
  %v55 = vld [vmem:[%s0 + $0xa0] sm:$0xf]
  %v56 = vld [vmem:[%s0 + $0xa4] sm:$0xf]
  %v57 = vld [vmem:[%s0 + $0xa8] sm:$0xf]
  %v58 = vld [vmem:[%s0 + $0xac] sm:$0xf]
  %v59 = vld [vmem:[%s0 + $0xb0] sm:$0xf]
  %v60 = vld [vmem:[%s0 + $0xb4] sm:$0xf]
  %v61 = vld [vmem:[%s0 + $0xb8] sm:$0xf]
  %v62 = vld [vmem:[%s0 + $0xbc] sm:$0xf]
  %v63 = vld [vmem:[%s0 + $0xc0] sm:$0xf]
  %v64 = vld [vmem:[%s1] sm:$0xf]
  %v65 = vld [vmem:[%s1 + $0x4] sm:$0xf]
  %v66 = vld [vmem:[%s1 + $0x8] sm:$0xf]
  %v67 = vld [vmem:[%s1 + $0xc] sm:$0xf]
  %v68 = vld [vmem:[%s1 + $0x10] sm:$0xf]
  %v69 = vld [vmem:[%s1 + $0x14] sm:$0xf]
  %v70 = vld [vmem:[%s1 + $0x18] sm:$0xf]
  %v71 = vld [vmem:[%s1 + $0x1c] sm:$0xf]
  %v72 = vld [vmem:[%s2] sm:$0x1]
  %v74 = vperm.slane %v72, 0
  %v125 = vunpack.c.l.b16 %v15
  %v126 = vunpack.c.l.b16 %v16
  %v127 = vunpack.c.l.b16 %v17
  %v128 = vunpack.c.l.b16 %v18
  %v129 = vunpack.c.l.b16 %v19
  %v130 = vunpack.c.l.b16 %v20
  %v131 = vunpack.c.l.b16 %v21
  %v132 = vunpack.c.l.b16 %v22
  %v133 = vunpack.c.l.b16 %v23
  %v134 = vunpack.c.l.b16 %v24
  %v135 = vunpack.c.l.b16 %v25
  %v136 = vunpack.c.l.b16 %v26
  %v137 = vunpack.c.l.b16 %v27
  %v138 = vunpack.c.l.b16 %v28
  %v139 = vunpack.c.l.b16 %v29
  %v140 = vunpack.c.l.b16 %v30
  %v141 = vunpack.c.l.b16 %v31
  %v142 = vunpack.c.l.b16 %v32
  %v143 = vunpack.c.l.b16 %v33
  %v144 = vunpack.c.l.b16 %v34
  %v145 = vunpack.c.l.b16 %v35
  %v146 = vunpack.c.l.b16 %v36
  %v147 = vunpack.c.l.b16 %v37
  %v148 = vunpack.c.l.b16 %v38
  %v149 = vunpack.c.l.b16 %v39
  %v150 = vunpack.c.l.b16 %v40
  %v151 = vunpack.c.l.b16 %v41
  %v152 = vunpack.c.l.b16 %v42
  %v153 = vunpack.c.l.b16 %v43
  %v154 = vunpack.c.l.b16 %v44
  %v155 = vunpack.c.l.b16 %v45
  %v156 = vunpack.c.l.b16 %v46
  %v157 = vunpack.c.l.b16 %v47
  %v158 = vunpack.c.l.b16 %v48
  %v159 = vunpack.c.l.b16 %v49
  %v160 = vunpack.c.l.b16 %v50
  %v161 = vunpack.c.l.b16 %v51
  %v162 = vunpack.c.l.b16 %v52
  %v163 = vunpack.c.l.b16 %v53
  %v164 = vunpack.c.l.b16 %v54
  %v165 = vunpack.c.l.b16 %v55
  %v166 = vunpack.c.l.b16 %v56
  %v167 = vunpack.c.l.b16 %v57
  %v168 = vunpack.c.l.b16 %v58
  %v169 = vunpack.c.l.b16 %v59
  %v170 = vunpack.c.l.b16 %v60
  %v171 = vunpack.c.l.b16 %v61
  %v172 = vunpack.c.l.b16 %v62
  %v173 = vunpack.c.l.b16 %v63
  %v174 = vpack.c.b16 %v126, %v125
  %v175 = vpack.c.b16 %v128, %v127
  %v176 = vpack.c.b16 %v130, %v129
  %v177 = vpack.c.b16 %v132, %v131
  %v178 = vpack.c.b16 %v134, %v133
  %v179 = vpack.c.b16 %v136, %v135
  %v180 = vpack.c.b16 %v138, %v137
  %v181 = vpack.c.b16 %v140, %v139
  %v182 = vpack.c.b16 %v142, %v141
  %v183 = vpack.c.b16 %v144, %v143
  %v184 = vpack.c.b16 %v146, %v145
  %v185 = vpack.c.b16 %v148, %v147
  %v186 = vpack.c.b16 %v150, %v149
  %v187 = vpack.c.b16 %v152, %v151
  %v188 = vpack.c.b16 %v154, %v153
  %v189 = vpack.c.b16 %v156, %v155
  %v190 = vpack.c.b16 %v158, %v157
  %v191 = vpack.c.b16 %v160, %v159
  %v192 = vpack.c.b16 %v162, %v161
  %v193 = vpack.c.b16 %v164, %v163
  %v194 = vpack.c.b16 %v166, %v165
  %v195 = vpack.c.b16 %v168, %v167
  %v196 = vpack.c.b16 %v170, %v169
  %v197 = vpack.c.b16 %v172, %v171
  %v198 = vpack.c.b16 %v173, %v173
  %v207 = vunpack.c.l.b16 %v64
  %v208 = vunpack.c.l.b16 %v65
  %v209 = vunpack.c.l.b16 %v66
  %v210 = vunpack.c.l.b16 %v67
  %v211 = vunpack.c.l.b16 %v68
  %v212 = vunpack.c.l.b16 %v69
  %v213 = vunpack.c.l.b16 %v70
  %v214 = vunpack.c.l.b16 %v71
  %v215 = vpack.c.b16 %v208, %v207
  %v216 = vpack.c.b16 %v210, %v209
  %v217 = vpack.c.b16 %v212, %v211
  %v218 = vpack.c.b16 %v214, %v213
  %vm223 = vcmask 523264
  %v225 = vsel %vm223, %v174, 0
  %v228 = vsel %vm223, %v175, 0
  %v231 = vsel %vm223, %v176, 0
  %v234 = vsel %vm223, %v177, 0
  %v237 = vsel %vm223, %v178, 0
  %v240 = vsel %vm223, %v179, 0
  %v243 = vsel %vm223, %v180, 0
  %v246 = vsel %vm223, %v181, 0
  %v249 = vsel %vm223, %v182, 0
  %v252 = vsel %vm223, %v183, 0
  %v255 = vsel %vm223, %v184, 0
  %v258 = vsel %vm223, %v185, 0
  %v261 = vsel %vm223, %v186, 0
  %v264 = vsel %vm223, %v187, 0
  %v267 = vsel %vm223, %v188, 0
  %v270 = vsel %vm223, %v189, 0
  %v273 = vsel %vm223, %v190, 0
  %v276 = vsel %vm223, %v191, 0
  %v279 = vsel %vm223, %v192, 0
  %v282 = vsel %vm223, %v193, 0
  %v285 = vsel %vm223, %v194, 0
  %v288 = vsel %vm223, %v195, 0
  %v291 = vsel %vm223, %v196, 0
  %v294 = vsel %vm223, %v197, 0
  %v297 = vsel %vm223, %v198, 0
  %299 = vmatpush.bf16.msra.mxu0 0
  %300 = vmatpush.bf16.msra.mxu0 0
  %301 = vmatpush.bf16.msra.mxu0 0
  %302 = vmatpush.bf16.msra.mxu0 0
  %303 = vmatpush.bf16.msra.mxu0 %v218
  %304 = vmatpush.bf16.msra.mxu0 %v217
  %305 = vmatpush.bf16.msra.mxu0 %v216
  %306 = vmatpush.bf16.msra.mxu0 %v215
  %307 = vmatmul.bf16.gmra.mxu0 %v225
  %v308 = vpop.f32.mrf.mxu0
  %v309 = vadd.f32 %v74, %v308
  %v310 = vpop.f32.mrf.mxu0
  %v311 = vadd.f32 %v74, %v310
  %312 = vmatmul.bf16.gmra.mxu0 %v228
  %v313 = vpop.f32.mrf.mxu0
  %v314 = vadd.f32 %v74, %v313
  %v315 = vpop.f32.mrf.mxu0
  %v316 = vadd.f32 %v74, %v315
  %317 = vmatmul.bf16.gmra.mxu0 %v231
  %v318 = vpop.f32.mrf.mxu0
  %v319 = vadd.f32 %v74, %v318
  %v320 = vpop.f32.mrf.mxu0
  %v321 = vadd.f32 %v74, %v320
  %322 = vmatmul.bf16.gmra.mxu0 %v234
  %v323 = vpop.f32.mrf.mxu0
  %v324 = vadd.f32 %v74, %v323
  %v325 = vpop.f32.mrf.mxu0
  %v326 = vadd.f32 %v74, %v325
  %327 = vmatmul.bf16.gmra.mxu0 %v237
  %v328 = vpop.f32.mrf.mxu0
  %v329 = vadd.f32 %v74, %v328
  %v330 = vpop.f32.mrf.mxu0
  %v331 = vadd.f32 %v74, %v330
  %332 = vmatmul.bf16.gmra.mxu0 %v240
  %v333 = vpop.f32.mrf.mxu0
  %v334 = vadd.f32 %v74, %v333
  %v335 = vpop.f32.mrf.mxu0
  %v336 = vadd.f32 %v74, %v335
  %337 = vmatmul.bf16.gmra.mxu0 %v243
  %v338 = vpop.f32.mrf.mxu0
  %v339 = vadd.f32 %v74, %v338
  %v340 = vpop.f32.mrf.mxu0
  %v341 = vadd.f32 %v74, %v340
  %342 = vmatmul.bf16.gmra.mxu0 %v246
  %v343 = vpop.f32.mrf.mxu0
  %v344 = vadd.f32 %v74, %v343
  %v345 = vpop.f32.mrf.mxu0
  %v346 = vadd.f32 %v74, %v345
  %347 = vmatmul.bf16.gmra.mxu0 %v249
  %v348 = vpop.f32.mrf.mxu0
  %v349 = vadd.f32 %v74, %v348
  %v350 = vpop.f32.mrf.mxu0
  %v351 = vadd.f32 %v74, %v350
  %352 = vmatmul.bf16.gmra.mxu0 %v252
  %v353 = vpop.f32.mrf.mxu0
  %v354 = vadd.f32 %v74, %v353
  %v355 = vpop.f32.mrf.mxu0
  %v356 = vadd.f32 %v74, %v355
  %357 = vmatmul.bf16.gmra.mxu0 %v255
  %v358 = vpop.f32.mrf.mxu0
  %v359 = vadd.f32 %v74, %v358
  %v360 = vpop.f32.mrf.mxu0
  %v361 = vadd.f32 %v74, %v360
  %362 = vmatmul.bf16.gmra.mxu0 %v258
  %v363 = vpop.f32.mrf.mxu0
  %v364 = vadd.f32 %v74, %v363
  %v365 = vpop.f32.mrf.mxu0
  %v366 = vadd.f32 %v74, %v365
  %367 = vmatmul.bf16.gmra.mxu0 %v261
  %v368 = vpop.f32.mrf.mxu0
  %v369 = vadd.f32 %v74, %v368
  %v370 = vpop.f32.mrf.mxu0
  %v371 = vadd.f32 %v74, %v370
  %372 = vmatmul.bf16.gmra.mxu0 %v264
  %v373 = vpop.f32.mrf.mxu0
  %v374 = vadd.f32 %v74, %v373
  %v375 = vpop.f32.mrf.mxu0
  %v376 = vadd.f32 %v74, %v375
  %377 = vmatmul.bf16.gmra.mxu0 %v267
  %v378 = vpop.f32.mrf.mxu0
  %v379 = vadd.f32 %v74, %v378
  %v380 = vpop.f32.mrf.mxu0
  %v381 = vadd.f32 %v74, %v380
  %382 = vmatmul.bf16.gmra.mxu0 %v270
  %v383 = vpop.f32.mrf.mxu0
  %v384 = vadd.f32 %v74, %v383
  %v385 = vpop.f32.mrf.mxu0
  %v386 = vadd.f32 %v74, %v385
  %387 = vmatmul.bf16.gmra.mxu0 %v273
  %v388 = vpop.f32.mrf.mxu0
  %v389 = vadd.f32 %v74, %v388
  %v390 = vpop.f32.mrf.mxu0
  %v391 = vadd.f32 %v74, %v390
  %392 = vmatmul.bf16.gmra.mxu0 %v276
  %v393 = vpop.f32.mrf.mxu0
  %v394 = vadd.f32 %v74, %v393
  %v395 = vpop.f32.mrf.mxu0
  %v396 = vadd.f32 %v74, %v395
  %397 = vmatmul.bf16.gmra.mxu0 %v279
  %v398 = vpop.f32.mrf.mxu0
  %v399 = vadd.f32 %v74, %v398
  %v400 = vpop.f32.mrf.mxu0
  %v401 = vadd.f32 %v74, %v400
  %402 = vmatmul.bf16.gmra.mxu0 %v282
  %v403 = vpop.f32.mrf.mxu0
  %v404 = vadd.f32 %v74, %v403
  %v405 = vpop.f32.mrf.mxu0
  %v406 = vadd.f32 %v74, %v405
  %407 = vmatmul.bf16.gmra.mxu0 %v285
  %v408 = vpop.f32.mrf.mxu0
  %v409 = vadd.f32 %v74, %v408
  %v410 = vpop.f32.mrf.mxu0
  %v411 = vadd.f32 %v74, %v410
  %412 = vmatmul.bf16.gmra.mxu0 %v288
  %v413 = vpop.f32.mrf.mxu0
  %v414 = vadd.f32 %v74, %v413
  %v415 = vpop.f32.mrf.mxu0
  %v416 = vadd.f32 %v74, %v415
  %417 = vmatmul.bf16.gmra.mxu0 %v291
  %v418 = vpop.f32.mrf.mxu0
  %v419 = vadd.f32 %v74, %v418
  %v420 = vpop.f32.mrf.mxu0
  %v421 = vadd.f32 %v74, %v420
  %422 = vmatmul.bf16.gmra.mxu0 %v294
  %v423 = vpop.f32.mrf.mxu0
  %v424 = vadd.f32 %v74, %v423
  %v425 = vpop.f32.mrf.mxu0
  %v426 = vadd.f32 %v74, %v425
  %427 = vmatmul.bf16.gmra.mxu0 %v297
  %v428 = vpop.f32.mrf.mxu0
  %v429 = vadd.f32 %v74, %v428
  %v430 = vpop.f32.mrf.mxu0
  %431 = vdwg.mxu0
  %v432 = vmax.f32 %v309, 0.0
  %v433 = vmax.f32 %v311, 0.0
  %v434 = vmax.f32 %v314, 0.0
  %v435 = vmax.f32 %v316, 0.0
  %v436 = vmax.f32 %v319, 0.0
  %v437 = vmax.f32 %v321, 0.0
  %v438 = vmax.f32 %v324, 0.0
  %v439 = vmax.f32 %v326, 0.0
  %v440 = vmax.f32 %v329, 0.0
  %v441 = vmax.f32 %v331, 0.0
  %v442 = vmax.f32 %v334, 0.0
  %v443 = vmax.f32 %v336, 0.0
  %v444 = vmax.f32 %v339, 0.0
  %v445 = vmax.f32 %v341, 0.0
  %v446 = vmax.f32 %v344, 0.0
  %v447 = vmax.f32 %v346, 0.0
  %v448 = vmax.f32 %v349, 0.0
  %v449 = vmax.f32 %v351, 0.0
  %v450 = vmax.f32 %v354, 0.0
  %v451 = vmax.f32 %v356, 0.0
  %v452 = vmax.f32 %v359, 0.0
  %v453 = vmax.f32 %v361, 0.0
  %v454 = vmax.f32 %v364, 0.0
  %v455 = vmax.f32 %v366, 0.0
  %v456 = vmax.f32 %v369, 0.0
  %v457 = vmax.f32 %v371, 0.0
  %v458 = vmax.f32 %v374, 0.0
  %v459 = vmax.f32 %v376, 0.0
  %v460 = vmax.f32 %v379, 0.0
  %v461 = vmax.f32 %v381, 0.0
  %v462 = vmax.f32 %v384, 0.0
  %v463 = vmax.f32 %v386, 0.0
  %v464 = vmax.f32 %v389, 0.0
  %v465 = vmax.f32 %v391, 0.0
  %v466 = vmax.f32 %v394, 0.0
  %v467 = vmax.f32 %v396, 0.0
  %v468 = vmax.f32 %v399, 0.0
  %v469 = vmax.f32 %v401, 0.0
  %v470 = vmax.f32 %v404, 0.0
  %v471 = vmax.f32 %v406, 0.0
  %v472 = vmax.f32 %v409, 0.0
  %v473 = vmax.f32 %v411, 0.0
  %v474 = vmax.f32 %v414, 0.0
  %v475 = vmax.f32 %v416, 0.0
  %v476 = vmax.f32 %v419, 0.0
  %v477 = vmax.f32 %v421, 0.0
  %v478 = vmax.f32 %v424, 0.0
  %v479 = vmax.f32 %v426, 0.0
  %v480 = vmax.f32 %v429, 0.0
  %v481 = vpack.c.bf16 %v432, %v432
  %v482 = vpack.c.bf16 %v433, %v433
  %v483 = vpack.c.bf16 %v434, %v434
  %v484 = vpack.c.bf16 %v435, %v435
  %v485 = vpack.c.bf16 %v436, %v436
  %v486 = vpack.c.bf16 %v437, %v437
  %v487 = vpack.c.bf16 %v438, %v438
  %v488 = vpack.c.bf16 %v439, %v439
  %v489 = vpack.c.bf16 %v440, %v440
  %v490 = vpack.c.bf16 %v441, %v441
  %v491 = vpack.c.bf16 %v442, %v442
  %v492 = vpack.c.bf16 %v443, %v443
  %v493 = vpack.c.bf16 %v444, %v444
  %v494 = vpack.c.bf16 %v445, %v445
  %v495 = vpack.c.bf16 %v446, %v446
  %v496 = vpack.c.bf16 %v447, %v447
  %v497 = vpack.c.bf16 %v448, %v448
  %v498 = vpack.c.bf16 %v449, %v449
  %v499 = vpack.c.bf16 %v450, %v450
  %v500 = vpack.c.bf16 %v451, %v451
  %v501 = vpack.c.bf16 %v452, %v452
  %v502 = vpack.c.bf16 %v453, %v453
  %v503 = vpack.c.bf16 %v454, %v454
  %v504 = vpack.c.bf16 %v455, %v455
  %v505 = vpack.c.bf16 %v456, %v456
  %v506 = vpack.c.bf16 %v457, %v457
  %v507 = vpack.c.bf16 %v458, %v458
  %v508 = vpack.c.bf16 %v459, %v459
  %v509 = vpack.c.bf16 %v460, %v460
  %v510 = vpack.c.bf16 %v461, %v461
  %v511 = vpack.c.bf16 %v462, %v462
  %v512 = vpack.c.bf16 %v463, %v463
  %v513 = vpack.c.bf16 %v464, %v464
  %v514 = vpack.c.bf16 %v465, %v465
  %v515 = vpack.c.bf16 %v466, %v466
  %v516 = vpack.c.bf16 %v467, %v467
  %v517 = vpack.c.bf16 %v468, %v468
  %v518 = vpack.c.bf16 %v469, %v469
  %v519 = vpack.c.bf16 %v470, %v470
  %v520 = vpack.c.bf16 %v471, %v471
  %v521 = vpack.c.bf16 %v472, %v472
  %v522 = vpack.c.bf16 %v473, %v473
  %v523 = vpack.c.bf16 %v474, %v474
  %v524 = vpack.c.bf16 %v475, %v475
  %v525 = vpack.c.bf16 %v476, %v476
  %v526 = vpack.c.bf16 %v477, %v477
  %v527 = vpack.c.bf16 %v478, %v478
  %v528 = vpack.c.bf16 %v479, %v479
  %v529 = vpack.c.bf16 %v480, %v480
  %vm530 = vcmask 125952
  %531 = vst.msk [vmem:[%s3] sm:$0xf] %vm530, %v481
  %532 = vst.msk [vmem:[%s3 + $0x4] sm:$0xf] %vm530, %v482
  %533 = vst.msk [vmem:[%s3 + $0x8] sm:$0xf] %vm530, %v483
  %534 = vst.msk [vmem:[%s3 + $0xc] sm:$0xf] %vm530, %v484
  %535 = vst.msk [vmem:[%s3 + $0x10] sm:$0xf] %vm530, %v485
  %536 = vst.msk [vmem:[%s3 + $0x14] sm:$0xf] %vm530, %v486
  %537 = vst.msk [vmem:[%s3 + $0x18] sm:$0xf] %vm530, %v487
  %538 = vst.msk [vmem:[%s3 + $0x1c] sm:$0xf] %vm530, %v488
  %539 = vst.msk [vmem:[%s3 + $0x20] sm:$0xf] %vm530, %v489
  %540 = vst.msk [vmem:[%s3 + $0x24] sm:$0xf] %vm530, %v490
  %541 = vst.msk [vmem:[%s3 + $0x28] sm:$0xf] %vm530, %v491
  %542 = vst.msk [vmem:[%s3 + $0x2c] sm:$0xf] %vm530, %v492
  %543 = vst.msk [vmem:[%s3 + $0x30] sm:$0xf] %vm530, %v493
  %544 = vst.msk [vmem:[%s3 + $0x34] sm:$0xf] %vm530, %v494
  %545 = vst.msk [vmem:[%s3 + $0x38] sm:$0xf] %vm530, %v495
  %546 = vst.msk [vmem:[%s3 + $0x3c] sm:$0xf] %vm530, %v496
  %547 = vst.msk [vmem:[%s3 + $0x40] sm:$0xf] %vm530, %v497
  %548 = vst.msk [vmem:[%s3 + $0x44] sm:$0xf] %vm530, %v498
  %549 = vst.msk [vmem:[%s3 + $0x48] sm:$0xf] %vm530, %v499
  %550 = vst.msk [vmem:[%s3 + $0x4c] sm:$0xf] %vm530, %v500
  %551 = vst.msk [vmem:[%s3 + $0x50] sm:$0xf] %vm530, %v501
  %552 = vst.msk [vmem:[%s3 + $0x54] sm:$0xf] %vm530, %v502
  %553 = vst.msk [vmem:[%s3 + $0x58] sm:$0xf] %vm530, %v503
  %554 = vst.msk [vmem:[%s3 + $0x5c] sm:$0xf] %vm530, %v504
  %555 = vst.msk [vmem:[%s3 + $0x60] sm:$0xf] %vm530, %v505
  %556 = vst.msk [vmem:[%s3 + $0x64] sm:$0xf] %vm530, %v506
  %557 = vst.msk [vmem:[%s3 + $0x68] sm:$0xf] %vm530, %v507
  %558 = vst.msk [vmem:[%s3 + $0x6c] sm:$0xf] %vm530, %v508
  %559 = vst.msk [vmem:[%s3 + $0x70] sm:$0xf] %vm530, %v509
  %560 = vst.msk [vmem:[%s3 + $0x74] sm:$0xf] %vm530, %v510
  %561 = vst.msk [vmem:[%s3 + $0x78] sm:$0xf] %vm530, %v511
  %562 = vst.msk [vmem:[%s3 + $0x7c] sm:$0xf] %vm530, %v512
  %563 = vst.msk [vmem:[%s3 + $0x80] sm:$0xf] %vm530, %v513
  %564 = vst.msk [vmem:[%s3 + $0x84] sm:$0xf] %vm530, %v514
  %565 = vst.msk [vmem:[%s3 + $0x88] sm:$0xf] %vm530, %v515
  %566 = vst.msk [vmem:[%s3 + $0x8c] sm:$0xf] %vm530, %v516
  %567 = vst.msk [vmem:[%s3 + $0x90] sm:$0xf] %vm530, %v517
  %568 = vst.msk [vmem:[%s3 + $0x94] sm:$0xf] %vm530, %v518
  %569 = vst.msk [vmem:[%s3 + $0x98] sm:$0xf] %vm530, %v519
  %570 = vst.msk [vmem:[%s3 + $0x9c] sm:$0xf] %vm530, %v520
  %571 = vst.msk [vmem:[%s3 + $0xa0] sm:$0xf] %vm530, %v521
  %572 = vst.msk [vmem:[%s3 + $0xa4] sm:$0xf] %vm530, %v522
  %573 = vst.msk [vmem:[%s3 + $0xa8] sm:$0xf] %vm530, %v523
  %574 = vst.msk [vmem:[%s3 + $0xac] sm:$0xf] %vm530, %v524
  %575 = vst.msk [vmem:[%s3 + $0xb0] sm:$0xf] %vm530, %v525
  %576 = vst.msk [vmem:[%s3 + $0xb4] sm:$0xf] %vm530, %v526
  %577 = vst.msk [vmem:[%s3 + $0xb8] sm:$0xf] %vm530, %v527
  %578 = vst.msk [vmem:[%s3 + $0xbc] sm:$0xf] %vm530, %v528
  %579 = vst.msk [vmem:[%s3 + $0xc0] sm:$0xf] %vm530, %v529
  // Predicated region
  $region14: #{sample_convnet_forward.5} parent=0 // pred_check
    _
  $region15: #{sample_convnet_forward.5} parent=0 // pred_check_branch
    %581 = sbr.rel (0) target = $region17
  $region16: #{sample_convnet_forward.5} parent=0 // pred_region
    _
  $region17: #{sample_convnet_forward.5} parent=0 // pred_fallthru
    _
  // Predicated region
  $region18: #{sample_convnet_forward.5} parent=0 // pred_check
    _
  $region19: #{sample_convnet_forward.5} parent=0 // pred_check_branch
    %583 = sbr.rel (0) target = $region21
  $region20: #{sample_convnet_forward.5} parent=0 // pred_region
    _
  $region21: #{sample_convnet_forward.5} parent=0 // pred_fallthru
    _

// kernel: sample_convnet_forward.6
$region0: #{sample_convnet_forward.6}
  #allocation0 [shape = 'u32[]', space=smem, size = 0x4, offset = 0x4, fixed_abs, tag = 'smem constant byte address 0x4 - core index']
  #allocation1 [shape = 'u32[72,128]{1,0:T(1,128)}', space=vmem, size = 0x9000, scoped, tag = 'internal scratch']
  %s0 = inlined_call_operand.vmem [shape: bf16[2,14,14,16], index: 0, kind: input, shape index: {}]
  %s1 = inlined_call_operand.vmem [shape: bf16[2,13,13,16], index: 1, kind: output, shape index: {}]
  %s2 = sld [smem:[#allocation0]]
  $region14: #{sample_convnet_forward.6} parent=0
    _
  %s4 = ssub.s32 1, %s2
  %s5 = scalar_select 0, %s4, %s2
  // Predicated region
  $region2: #{sample_convnet_forward.6} parent=0 // pred_check
    _
  $region3: #{sample_convnet_forward.6} parent=0 // pred_check_branch
    %7 = sbr.rel (0) target = $region5
  $region4: #{sample_convnet_forward.6} parent=0 // pred_region
    _
  $region5: #{sample_convnet_forward.6} parent=0 // pred_fallthru
    _
  %v8 = vld [vmem:[%s0] sm:$0xf]
  %v9 = vld [vmem:[%s0 + $0x4] sm:$0x7]
  %v10 = vld [vmem:[%s0 + $0x8] sm:$0xf]
  %v11 = vld [vmem:[%s0 + $0xc] sm:$0x7]
  %v12 = vld [vmem:[%s0 + $0x10] sm:$0xf]
  %v13 = vld [vmem:[%s0 + $0x14] sm:$0x7]
  %v14 = vld [vmem:[%s0 + $0x18] sm:$0xf]
  %v15 = vld [vmem:[%s0 + $0x1c] sm:$0x7]
  %v16 = vld [vmem:[%s0 + $0x20] sm:$0xf]
  %v17 = vld [vmem:[%s0 + $0x24] sm:$0x7]
  %v18 = vld [vmem:[%s0 + $0x28] sm:$0xf]
  %v19 = vld [vmem:[%s0 + $0x2c] sm:$0x7]
  %v20 = vld [vmem:[%s0 + $0x30] sm:$0xf]
  %v21 = vld [vmem:[%s0 + $0x34] sm:$0x7]
  %v22 = vld [vmem:[%s0 + $0x38] sm:$0xf]
  %v23 = vld [vmem:[%s0 + $0x3c] sm:$0x7]
  %v24 = vld [vmem:[%s0 + $0x40] sm:$0xf]
  %v25 = vld [vmem:[%s0 + $0x44] sm:$0x7]
  %v26 = vld [vmem:[%s0 + $0x48] sm:$0xf]
  %v27 = vld [vmem:[%s0 + $0x4c] sm:$0x7]
  %v28 = vld [vmem:[%s0 + $0x50] sm:$0xf]
  %v29 = vld [vmem:[%s0 + $0x54] sm:$0x7]
  %v30 = vld [vmem:[%s0 + $0x58] sm:$0xf]
  %v31 = vld [vmem:[%s0 + $0x5c] sm:$0x7]
  %v32 = vld [vmem:[%s0 + $0x60] sm:$0xf]
  %v33 = vld [vmem:[%s0 + $0x64] sm:$0x7]
  %v34 = vld [vmem:[%s0 + $0x68] sm:$0xf]
  %v35 = vld [vmem:[%s0 + $0x6c] sm:$0x7]
  %v36 = vld [vmem:[%s0 + $0x70] sm:$0xf]
  %v37 = vld [vmem:[%s0 + $0x74] sm:$0x7]
  %v38 = vld [vmem:[%s0 + $0x78] sm:$0xf]
  %v39 = vld [vmem:[%s0 + $0x7c] sm:$0x7]
  %v40 = vld [vmem:[%s0 + $0x80] sm:$0xf]
  %v41 = vld [vmem:[%s0 + $0x84] sm:$0x7]
  %v42 = vld [vmem:[%s0 + $0x88] sm:$0xf]
  %v43 = vld [vmem:[%s0 + $0x8c] sm:$0x7]
  %v44 = vld [vmem:[%s0 + $0x90] sm:$0xf]
  %v45 = vld [vmem:[%s0 + $0x94] sm:$0x7]
  %v46 = vld [vmem:[%s0 + $0x98] sm:$0xf]
  %v47 = vld [vmem:[%s0 + $0x9c] sm:$0x7]
  %v48 = vld [vmem:[%s0 + $0xa0] sm:$0xf]
  %v49 = vld [vmem:[%s0 + $0xa4] sm:$0x7]
  %v50 = vld [vmem:[%s0 + $0xa8] sm:$0xf]
  %v51 = vld [vmem:[%s0 + $0xac] sm:$0x7]
  %v52 = vld [vmem:[%s0 + $0xb0] sm:$0xf]
  %v53 = vld [vmem:[%s0 + $0xb4] sm:$0x7]
  %v54 = vld [vmem:[%s0 + $0xb8] sm:$0xf]
  %v55 = vld [vmem:[%s0 + $0xbc] sm:$0x7]
  %v56 = vld [vmem:[%s0 + $0xc0] sm:$0xf]
  %v57 = vld [vmem:[%s0 + $0xc4] sm:$0x7]
  %v58 = vld [vmem:[%s0 + $0xc8] sm:$0xf]
  %v59 = vld [vmem:[%s0 + $0xcc] sm:$0x7]
  %v60 = vld [vmem:[%s0 + $0xd0] sm:$0xf]
  %v61 = vld [vmem:[%s0 + $0xd4] sm:$0x7]
  %v62 = vld [vmem:[%s0 + $0xd8] sm:$0xf]
  %v63 = vld [vmem:[%s0 + $0xdc] sm:$0x7]
  %v64 = vunpack.c.l.bf16 %v8
  %v65 = vunpack.c.l.bf16 %v9
  %v66 = vunpack.c.l.bf16 %v10
  %v67 = vunpack.c.l.bf16 %v11
  %v68 = vunpack.c.l.bf16 %v12
  %v69 = vunpack.c.l.bf16 %v13
  %v70 = vunpack.c.l.bf16 %v14
  %v71 = vunpack.c.l.bf16 %v15
  %v72 = vunpack.c.l.bf16 %v16
  %v73 = vunpack.c.l.bf16 %v17
  %v74 = vunpack.c.l.bf16 %v18
  %v75 = vunpack.c.l.bf16 %v19
  %v76 = vunpack.c.l.bf16 %v20
  %v77 = vunpack.c.l.bf16 %v21
  %v78 = vunpack.c.l.bf16 %v22
  %v79 = vunpack.c.l.bf16 %v23
  %v80 = vunpack.c.l.bf16 %v24
  %v81 = vunpack.c.l.bf16 %v25
  %v82 = vunpack.c.l.bf16 %v26
  %v83 = vunpack.c.l.bf16 %v27
  %v84 = vunpack.c.l.bf16 %v28
  %v85 = vunpack.c.l.bf16 %v29
  %v86 = vunpack.c.l.bf16 %v30
  %v87 = vunpack.c.l.bf16 %v31
  %v88 = vunpack.c.l.bf16 %v32
  %v89 = vunpack.c.l.bf16 %v33
  %v90 = vunpack.c.l.bf16 %v36
  %v91 = vunpack.c.l.bf16 %v37
  %v92 = vunpack.c.l.bf16 %v38
  %v93 = vunpack.c.l.bf16 %v39
  %v94 = vunpack.c.l.bf16 %v40
  %v95 = vunpack.c.l.bf16 %v41
  %v96 = vunpack.c.l.bf16 %v42
  %v97 = vunpack.c.l.bf16 %v43
  %v98 = vunpack.c.l.bf16 %v44
  %v99 = vunpack.c.l.bf16 %v45
  %v100 = vunpack.c.l.bf16 %v46
  %v101 = vunpack.c.l.bf16 %v47
  %v102 = vunpack.c.l.bf16 %v48
  %v103 = vunpack.c.l.bf16 %v49
  %v104 = vunpack.c.l.bf16 %v50
  %v105 = vunpack.c.l.bf16 %v51
  %v106 = vunpack.c.l.bf16 %v52
  %v107 = vunpack.c.l.bf16 %v53
  %v108 = vunpack.c.l.bf16 %v54
  %v109 = vunpack.c.l.bf16 %v55
  %v110 = vunpack.c.l.bf16 %v56
  %v111 = vunpack.c.l.bf16 %v57
  %v112 = vunpack.c.l.bf16 %v58
  %v113 = vunpack.c.l.bf16 %v59
  %v114 = vunpack.c.l.bf16 %v60
  %v115 = vunpack.c.l.bf16 %v61
  %vm168 = vcmask 1046528
  %v169 = vrot.slane %v64, 1
  %v170 = vrot.slane %v65, 1
  %v171 = vsel %vm168, %v169, %v170
  %v172 = vrot.slane %v66, 1
  %v173 = vrot.slane %v67, 1
  %v174 = vsel %vm168, %v172, %v173
  %v175 = vrot.slane %v68, 1
  %v176 = vrot.slane %v69, 1
  %v177 = vsel %vm168, %v175, %v176
  %v178 = vrot.slane %v70, 1
  %v179 = vrot.slane %v71, 1
  %v180 = vsel %vm168, %v178, %v179
  %v181 = vrot.slane %v72, 1
  %v182 = vrot.slane %v73, 1
  %v183 = vsel %vm168, %v181, %v182
  %v184 = vrot.slane %v74, 1
  %v185 = vrot.slane %v75, 1
  %v186 = vsel %vm168, %v184, %v185
  %v187 = vrot.slane %v76, 1
  %v188 = vrot.slane %v77, 1
  %v189 = vsel %vm168, %v187, %v188
  %v190 = vrot.slane %v78, 1
  %v191 = vrot.slane %v79, 1
  %v192 = vsel %vm168, %v190, %v191
  %v193 = vrot.slane %v80, 1
  %v194 = vrot.slane %v81, 1
  %v195 = vsel %vm168, %v193, %v194
  %v196 = vrot.slane %v82, 1
  %v197 = vrot.slane %v83, 1
  %v198 = vsel %vm168, %v196, %v197
  %v199 = vrot.slane %v84, 1
  %v200 = vrot.slane %v85, 1
  %v201 = vsel %vm168, %v199, %v200
  %v202 = vrot.slane %v86, 1
  %v203 = vrot.slane %v87, 1
  %v204 = vsel %vm168, %v202, %v203
  %v205 = vrot.slane %v88, 1
  %v206 = vrot.slane %v89, 1
  %v207 = vsel %vm168, %v205, %v206
  %v208 = vrot.slane %v90, 1
  %v209 = vrot.slane %v91, 1
  %v210 = vsel %vm168, %v208, %v209
  %v211 = vrot.slane %v92, 1
  %v212 = vrot.slane %v93, 1
  %v213 = vsel %vm168, %v211, %v212
  %v214 = vrot.slane %v94, 1
  %v215 = vrot.slane %v95, 1
  %v216 = vsel %vm168, %v214, %v215
  %v217 = vrot.slane %v96, 1
  %v218 = vrot.slane %v97, 1
  %v219 = vsel %vm168, %v217, %v218
  %v220 = vrot.slane %v98, 1
  %v221 = vrot.slane %v99, 1
  %v222 = vsel %vm168, %v220, %v221
  %v223 = vrot.slane %v100, 1
  %v224 = vrot.slane %v101, 1
  %v225 = vsel %vm168, %v223, %v224
  %v226 = vrot.slane %v102, 1
  %v227 = vrot.slane %v103, 1
  %v228 = vsel %vm168, %v226, %v227
  %v229 = vrot.slane %v104, 1
  %v230 = vrot.slane %v105, 1
  %v231 = vsel %vm168, %v229, %v230
  %v232 = vrot.slane %v106, 1
  %v233 = vrot.slane %v107, 1
  %v234 = vsel %vm168, %v232, %v233
  %v235 = vrot.slane %v108, 1
  %v236 = vrot.slane %v109, 1
  %v237 = vsel %vm168, %v235, %v236
  %v238 = vrot.slane %v110, 1
  %v239 = vrot.slane %v111, 1
  %v240 = vsel %vm168, %v238, %v239
  %v241 = vrot.slane %v112, 1
  %v242 = vrot.slane %v113, 1
  %v243 = vsel %vm168, %v241, %v242
  %v244 = vrot.slane %v114, 1
  %v245 = vrot.slane %v115, 1
  %v246 = vsel %vm168, %v244, %v245
  %v299 = vmax.f32 %v64, %v171
  %v300 = vmax.f32 %v65, %v170
  %v301 = vmax.f32 %v66, %v174
  %v302 = vmax.f32 %v67, %v173
  %v303 = vmax.f32 %v68, %v177
  %v304 = vmax.f32 %v69, %v176
  %v305 = vmax.f32 %v70, %v180
  %v306 = vmax.f32 %v71, %v179
  %v307 = vmax.f32 %v72, %v183
  %v308 = vmax.f32 %v73, %v182
  %v309 = vmax.f32 %v74, %v186
  %v310 = vmax.f32 %v75, %v185
  %v311 = vmax.f32 %v76, %v189
  %v312 = vmax.f32 %v77, %v188
  %v313 = vmax.f32 %v78, %v192
  %v314 = vmax.f32 %v79, %v191
  %v315 = vmax.f32 %v80, %v195
  %v316 = vmax.f32 %v81, %v194
  %v317 = vmax.f32 %v82, %v198
  %v318 = vmax.f32 %v83, %v197
  %v319 = vmax.f32 %v84, %v201
  %v320 = vmax.f32 %v85, %v200
  %v321 = vmax.f32 %v86, %v204
  %v322 = vmax.f32 %v87, %v203
  %v323 = vmax.f32 %v88, %v207
  %v324 = vmax.f32 %v89, %v206
  %v325 = vmax.f32 %v90, %v210
  %v326 = vmax.f32 %v91, %v209
  %v327 = vmax.f32 %v92, %v213
  %v328 = vmax.f32 %v93, %v212
  %v329 = vmax.f32 %v94, %v216
  %v330 = vmax.f32 %v95, %v215
  %v331 = vmax.f32 %v96, %v219
  %v332 = vmax.f32 %v97, %v218
  %v333 = vmax.f32 %v98, %v222
  %v334 = vmax.f32 %v99, %v221
  %v335 = vmax.f32 %v100, %v225
  %v336 = vmax.f32 %v101, %v224
  %v337 = vmax.f32 %v102, %v228
  %v338 = vmax.f32 %v103, %v227
  %v339 = vmax.f32 %v104, %v231
  %v340 = vmax.f32 %v105, %v230
  %v341 = vmax.f32 %v106, %v234
  %v342 = vmax.f32 %v107, %v233
  %v343 = vmax.f32 %v108, %v237
  %v344 = vmax.f32 %v109, %v236
  %v345 = vmax.f32 %v110, %v240
  %v346 = vmax.f32 %v111, %v239
  %v347 = vmax.f32 %v112, %v243
  %v348 = vmax.f32 %v113, %v242
  %v349 = vmax.f32 %v114, %v246
  %v350 = vmax.f32 %v115, %v245
  %v351 = vpack.c.bf16 %v299, %v299
  %v352 = vpack.c.bf16 %v300, %v300
  %v353 = vpack.c.bf16 %v301, %v301
  %v354 = vpack.c.bf16 %v302, %v302
  %v355 = vpack.c.bf16 %v303, %v303
  %v356 = vpack.c.bf16 %v304, %v304
  %v357 = vpack.c.bf16 %v305, %v305
  %v358 = vpack.c.bf16 %v306, %v306
  %v359 = vpack.c.bf16 %v307, %v307
  %v360 = vpack.c.bf16 %v308, %v308
  %v361 = vpack.c.bf16 %v309, %v309
  %v362 = vpack.c.bf16 %v310, %v310
  %v363 = vpack.c.bf16 %v311, %v311
  %v364 = vpack.c.bf16 %v312, %v312
  %v365 = vpack.c.bf16 %v313, %v313
  %v366 = vpack.c.bf16 %v314, %v314
  %v367 = vpack.c.bf16 %v315, %v315
  %v368 = vpack.c.bf16 %v316, %v316
  %v369 = vpack.c.bf16 %v317, %v317
  %v370 = vpack.c.bf16 %v318, %v318
  %v371 = vpack.c.bf16 %v319, %v319
  %v372 = vpack.c.bf16 %v320, %v320
  %v373 = vpack.c.bf16 %v321, %v321
  %v374 = vpack.c.bf16 %v322, %v322
  %v375 = vpack.c.bf16 %v323, %v323
  %v376 = vpack.c.bf16 %v324, %v324
  %v377 = vpack.c.bf16 %v325, %v325
  %v378 = vpack.c.bf16 %v326, %v326
  %v379 = vpack.c.bf16 %v327, %v327
  %v380 = vpack.c.bf16 %v328, %v328
  %v381 = vpack.c.bf16 %v329, %v329
  %v382 = vpack.c.bf16 %v330, %v330
  %v383 = vpack.c.bf16 %v331, %v331
  %v384 = vpack.c.bf16 %v332, %v332
  %v385 = vpack.c.bf16 %v333, %v333
  %v386 = vpack.c.bf16 %v334, %v334
  %v387 = vpack.c.bf16 %v335, %v335
  %v388 = vpack.c.bf16 %v336, %v336
  %v389 = vpack.c.bf16 %v337, %v337
  %v390 = vpack.c.bf16 %v338, %v338
  %v391 = vpack.c.bf16 %v339, %v339
  %v392 = vpack.c.bf16 %v340, %v340
  %v393 = vpack.c.bf16 %v341, %v341
  %v394 = vpack.c.bf16 %v342, %v342
  %v395 = vpack.c.bf16 %v343, %v343
  %v396 = vpack.c.bf16 %v344, %v344
  %v397 = vpack.c.bf16 %v345, %v345
  %v398 = vpack.c.bf16 %v346, %v346
  %v399 = vpack.c.bf16 %v347, %v347
  %v400 = vpack.c.bf16 %v348, %v348
  %v401 = vpack.c.bf16 %v349, %v349
  %v402 = vpack.c.bf16 %v350, %v350
  %v403 = vunpack.c.l.bf16 %v34
  %v404 = vunpack.c.l.bf16 %v35
  %v405 = vunpack.c.l.bf16 %v62
  %v406 = vunpack.c.l.bf16 %v63
  %v411 = vrot.slane %v403, 1
  %v412 = vrot.slane %v404, 1
  %v413 = vsel %vm168, %v411, %v412
  %v414 = vrot.slane %v405, 1
  %v415 = vrot.slane %v406, 1
  %v416 = vsel %vm168, %v414, %v415
  %v421 = vmax.f32 %v403, %v413
  %v422 = vmax.f32 %v404, %v412
  %v423 = vmax.f32 %v405, %v416
  %v424 = vmax.f32 %v406, %v415
  %v425 = vpack.c.bf16 %v421, %v421
  %v426 = vpack.c.bf16 %v422, %v422
  %v427 = vpack.c.bf16 %v423, %v423
  %v428 = vpack.c.bf16 %v424, %v424
  %v429 = vunpack.c.l.bf16 %v351
  %v430 = vunpack.c.l.bf16 %v352
  %v431 = vunpack.c.l.bf16 %v353
  %v432 = vunpack.c.l.bf16 %v354
  %v433 = vunpack.c.l.bf16 %v355
  %v434 = vunpack.c.l.bf16 %v356
  %v435 = vunpack.c.l.bf16 %v357
  %v436 = vunpack.c.l.bf16 %v358
  %v437 = vunpack.c.l.bf16 %v359
  %v438 = vunpack.c.l.bf16 %v360
  %v439 = vunpack.c.l.bf16 %v361
  %v440 = vunpack.c.l.bf16 %v362
  %v441 = vunpack.c.l.bf16 %v363
  %v442 = vunpack.c.l.bf16 %v364
  %v443 = vunpack.c.l.bf16 %v365
  %v444 = vunpack.c.l.bf16 %v366
  %v445 = vunpack.c.l.bf16 %v367
  %v446 = vunpack.c.l.bf16 %v368
  %v447 = vunpack.c.l.bf16 %v369
  %v448 = vunpack.c.l.bf16 %v370
  %v449 = vunpack.c.l.bf16 %v371
  %v450 = vunpack.c.l.bf16 %v372
  %v451 = vunpack.c.l.bf16 %v373
  %v452 = vunpack.c.l.bf16 %v374
  %v453 = vunpack.c.l.bf16 %v375
  %v454 = vunpack.c.l.bf16 %v376
  %v455 = vunpack.c.l.bf16 %v377
  %v456 = vunpack.c.l.bf16 %v378
  %v457 = vunpack.c.l.bf16 %v379
  %v458 = vunpack.c.l.bf16 %v380
  %v459 = vunpack.c.l.bf16 %v381
  %v460 = vunpack.c.l.bf16 %v382
  %v461 = vunpack.c.l.bf16 %v383
  %v462 = vunpack.c.l.bf16 %v384
  %v463 = vunpack.c.l.bf16 %v385
  %v464 = vunpack.c.l.bf16 %v386
  %v465 = vunpack.c.l.bf16 %v387
  %v466 = vunpack.c.l.bf16 %v388
  %v467 = vunpack.c.l.bf16 %v389
  %v468 = vunpack.c.l.bf16 %v390
  %v469 = vunpack.c.l.bf16 %v391
  %v470 = vunpack.c.l.bf16 %v392
  %v471 = vunpack.c.l.bf16 %v393
  %v472 = vunpack.c.l.bf16 %v394
  %v473 = vunpack.c.l.bf16 %v395
  %v474 = vunpack.c.l.bf16 %v396
  %v475 = vunpack.c.l.bf16 %v397
  %v476 = vunpack.c.l.bf16 %v398
  %v477 = vunpack.c.l.bf16 %v399
  %v478 = vunpack.c.l.bf16 %v400
  %v479 = vunpack.c.l.bf16 %v401
  %v480 = vunpack.c.l.bf16 %v402
  %v481 = vunpack.c.l.bf16 %v425
  %v482 = vunpack.c.l.bf16 %v426
  %v483 = vunpack.c.l.bf16 %v427
  %v484 = vunpack.c.l.bf16 %v428
  %v485 = vmax.f32 %v429, %v431
  %v486 = vmax.f32 %v430, %v432
  %v487 = vmax.f32 %v431, %v433
  %v488 = vmax.f32 %v432, %v434
  %v489 = vmax.f32 %v433, %v435
  %v490 = vmax.f32 %v434, %v436
  %v491 = vmax.f32 %v435, %v437
  %v492 = vmax.f32 %v436, %v438
  %v493 = vmax.f32 %v437, %v439
  %v494 = vmax.f32 %v438, %v440
  %v495 = vmax.f32 %v439, %v441
  %v496 = vmax.f32 %v440, %v442
  %v497 = vmax.f32 %v441, %v443
  %v498 = vmax.f32 %v442, %v444
  %v499 = vmax.f32 %v443, %v445
  %v500 = vmax.f32 %v444, %v446
  %v501 = vmax.f32 %v445, %v447
  %v502 = vmax.f32 %v446, %v448
  %v503 = vmax.f32 %v447, %v449
  %v504 = vmax.f32 %v448, %v450
  %v505 = vmax.f32 %v449, %v451
  %v506 = vmax.f32 %v450, %v452
  %v507 = vmax.f32 %v451, %v453
  %v508 = vmax.f32 %v452, %v454
  %v509 = vmax.f32 %v453, %v481
  %v510 = vmax.f32 %v454, %v482
  %v511 = vmax.f32 %v455, %v457
  %v512 = vmax.f32 %v456, %v458
  %v513 = vmax.f32 %v457, %v459
  %v514 = vmax.f32 %v458, %v460
  %v515 = vmax.f32 %v459, %v461
  %v516 = vmax.f32 %v460, %v462
  %v517 = vmax.f32 %v461, %v463
  %v518 = vmax.f32 %v462, %v464
  %v519 = vmax.f32 %v463, %v465
  %v520 = vmax.f32 %v464, %v466
  %v521 = vmax.f32 %v465, %v467
  %v522 = vmax.f32 %v466, %v468
  %v523 = vmax.f32 %v467, %v469
  %v524 = vmax.f32 %v468, %v470
  %v525 = vmax.f32 %v469, %v471
  %v526 = vmax.f32 %v470, %v472
  %v527 = vmax.f32 %v471, %v473
  %v528 = vmax.f32 %v472, %v474
  %v529 = vmax.f32 %v473, %v475
  %v530 = vmax.f32 %v474, %v476
  %v531 = vmax.f32 %v475, %v477
  %v532 = vmax.f32 %v476, %v478
  %v533 = vmax.f32 %v477, %v479
  %v534 = vmax.f32 %v478, %v480
  %v535 = vmax.f32 %v479, %v483
  %v536 = vmax.f32 %v480, %v484
  %v537 = vpack.c.bf16 %v485, %v485
  %v538 = vpack.c.bf16 %v486, %v486
  %v539 = vpack.c.bf16 %v487, %v487
  %v540 = vpack.c.bf16 %v488, %v488
  %v541 = vpack.c.bf16 %v489, %v489
  %v542 = vpack.c.bf16 %v490, %v490
  %v543 = vpack.c.bf16 %v491, %v491
  %v544 = vpack.c.bf16 %v492, %v492
  %v545 = vpack.c.bf16 %v493, %v493
  %v546 = vpack.c.bf16 %v494, %v494
  %v547 = vpack.c.bf16 %v495, %v495
  %v548 = vpack.c.bf16 %v496, %v496
  %v549 = vpack.c.bf16 %v497, %v497
  %v550 = vpack.c.bf16 %v498, %v498
  %v551 = vpack.c.bf16 %v499, %v499
  %v552 = vpack.c.bf16 %v500, %v500
  %v553 = vpack.c.bf16 %v501, %v501
  %v554 = vpack.c.bf16 %v502, %v502
  %v555 = vpack.c.bf16 %v503, %v503
  %v556 = vpack.c.bf16 %v504, %v504
  %v557 = vpack.c.bf16 %v505, %v505
  %v558 = vpack.c.bf16 %v506, %v506
  %v559 = vpack.c.bf16 %v507, %v507
  %v560 = vpack.c.bf16 %v508, %v508
  %v561 = vpack.c.bf16 %v509, %v509
  %v562 = vpack.c.bf16 %v510, %v510
  %v563 = vpack.c.bf16 %v511, %v511
  %v564 = vpack.c.bf16 %v512, %v512
  %v565 = vpack.c.bf16 %v513, %v513
  %v566 = vpack.c.bf16 %v514, %v514
  %v567 = vpack.c.bf16 %v515, %v515
  %v568 = vpack.c.bf16 %v516, %v516
  %v569 = vpack.c.bf16 %v517, %v517
  %v570 = vpack.c.bf16 %v518, %v518
  %v571 = vpack.c.bf16 %v519, %v519
  %v572 = vpack.c.bf16 %v520, %v520
  %v573 = vpack.c.bf16 %v521, %v521
  %v574 = vpack.c.bf16 %v522, %v522
  %v575 = vpack.c.bf16 %v523, %v523
  %v576 = vpack.c.bf16 %v524, %v524
  %v577 = vpack.c.bf16 %v525, %v525
  %v578 = vpack.c.bf16 %v526, %v526
  %v579 = vpack.c.bf16 %v527, %v527
  %v580 = vpack.c.bf16 %v528, %v528
  %v581 = vpack.c.bf16 %v529, %v529
  %v582 = vpack.c.bf16 %v530, %v530
  %v583 = vpack.c.bf16 %v531, %v531
  %v584 = vpack.c.bf16 %v532, %v532
  %v585 = vpack.c.bf16 %v533, %v533
  %v586 = vpack.c.bf16 %v534, %v534
  %v587 = vpack.c.bf16 %v535, %v535
  %v588 = vpack.c.bf16 %v536, %v536
  %vm589 = vcmask 125952
  %590 = vst.msk [vmem:[%s1] sm:$0xf] %vm589, %v537
  %vm591 = vcmask 124928
  %vm592 = vsmask.f32 2304
  %vm593 = vmand %vm591, %vm592
  %v594 = vld [vmem:[%s1 + $0x4] sm:$0x7]
  %v595 = vsel %vm593, %v538, %v594
  %596 = vst [vmem:[%s1 + $0x4] sm:$0x7] %v595
  %597 = vst.msk [vmem:[%s1 + $0x8] sm:$0xf] %vm589, %v539
  %v598 = vld [vmem:[%s1 + $0xc] sm:$0x7]
  %v599 = vsel %vm593, %v540, %v598
  %600 = vst [vmem:[%s1 + $0xc] sm:$0x7] %v599
  %601 = vst.msk [vmem:[%s1 + $0x10] sm:$0xf] %vm589, %v541
  %v602 = vld [vmem:[%s1 + $0x14] sm:$0x7]
  %v603 = vsel %vm593, %v542, %v602
  %604 = vst [vmem:[%s1 + $0x14] sm:$0x7] %v603
  %605 = vst.msk [vmem:[%s1 + $0x18] sm:$0xf] %vm589, %v543
  %v606 = vld [vmem:[%s1 + $0x1c] sm:$0x7]
  %v607 = vsel %vm593, %v544, %v606
  %608 = vst [vmem:[%s1 + $0x1c] sm:$0x7] %v607
  %609 = vst.msk [vmem:[%s1 + $0x20] sm:$0xf] %vm589, %v545
  %v610 = vld [vmem:[%s1 + $0x24] sm:$0x7]
  %v611 = vsel %vm593, %v546, %v610
  %612 = vst [vmem:[%s1 + $0x24] sm:$0x7] %v611
  %613 = vst.msk [vmem:[%s1 + $0x28] sm:$0xf] %vm589, %v547
  %v614 = vld [vmem:[%s1 + $0x2c] sm:$0x7]
  %v615 = vsel %vm593, %v548, %v614
  %616 = vst [vmem:[%s1 + $0x2c] sm:$0x7] %v615
  %617 = vst.msk [vmem:[%s1 + $0x30] sm:$0xf] %vm589, %v549
  %v618 = vld [vmem:[%s1 + $0x34] sm:$0x7]
  %v619 = vsel %vm593, %v550, %v618
  %620 = vst [vmem:[%s1 + $0x34] sm:$0x7] %v619
  %621 = vst.msk [vmem:[%s1 + $0x38] sm:$0xf] %vm589, %v551
  %v622 = vld [vmem:[%s1 + $0x3c] sm:$0x7]
  %v623 = vsel %vm593, %v552, %v622
  %624 = vst [vmem:[%s1 + $0x3c] sm:$0x7] %v623
  %625 = vst.msk [vmem:[%s1 + $0x40] sm:$0xf] %vm589, %v553
  %v626 = vld [vmem:[%s1 + $0x44] sm:$0x7]
  %v627 = vsel %vm593, %v554, %v626
  %628 = vst [vmem:[%s1 + $0x44] sm:$0x7] %v627
  %629 = vst.msk [vmem:[%s1 + $0x48] sm:$0xf] %vm589, %v555
  %v630 = vld [vmem:[%s1 + $0x4c] sm:$0x7]
  %v631 = vsel %vm593, %v556, %v630
  %632 = vst [vmem:[%s1 + $0x4c] sm:$0x7] %v631
  %633 = vst.msk [vmem:[%s1 + $0x50] sm:$0xf] %vm589, %v557
  %v634 = vld [vmem:[%s1 + $0x54] sm:$0x7]
  %v635 = vsel %vm593, %v558, %v634
  %636 = vst [vmem:[%s1 + $0x54] sm:$0x7] %v635
  %637 = vst.msk [vmem:[%s1 + $0x58] sm:$0xf] %vm589, %v559
  %v638 = vld [vmem:[%s1 + $0x5c] sm:$0x7]
  %v639 = vsel %vm593, %v560, %v638
  %640 = vst [vmem:[%s1 + $0x5c] sm:$0x7] %v639
  %641 = vst.msk [vmem:[%s1 + $0x60] sm:$0xf] %vm589, %v561
  %v642 = vld [vmem:[%s1 + $0x64] sm:$0x7]
  %v643 = vsel %vm593, %v562, %v642
  %644 = vst [vmem:[%s1 + $0x64] sm:$0x7] %v643
  %645 = vst.msk [vmem:[%s1 + $0x68] sm:$0xf] %vm589, %v563
  %v646 = vld [vmem:[%s1 + $0x6c] sm:$0x7]
  %v647 = vsel %vm593, %v564, %v646
  %648 = vst [vmem:[%s1 + $0x6c] sm:$0x7] %v647
  %649 = vst.msk [vmem:[%s1 + $0x70] sm:$0xf] %vm589, %v565
  %v650 = vld [vmem:[%s1 + $0x74] sm:$0x7]
  %v651 = vsel %vm593, %v566, %v650
  %652 = vst [vmem:[%s1 + $0x74] sm:$0x7] %v651
  %653 = vst.msk [vmem:[%s1 + $0x78] sm:$0xf] %vm589, %v567
  %v654 = vld [vmem:[%s1 + $0x7c] sm:$0x7]
  %v655 = vsel %vm593, %v568, %v654
  %656 = vst [vmem:[%s1 + $0x7c] sm:$0x7] %v655
  %657 = vst.msk [vmem:[%s1 + $0x80] sm:$0xf] %vm589, %v569
  %v658 = vld [vmem:[%s1 + $0x84] sm:$0x7]
  %v659 = vsel %vm593, %v570, %v658
  %660 = vst [vmem:[%s1 + $0x84] sm:$0x7] %v659
  %661 = vst.msk [vmem:[%s1 + $0x88] sm:$0xf] %vm589, %v571
  %v662 = vld [vmem:[%s1 + $0x8c] sm:$0x7]
  %v663 = vsel %vm593, %v572, %v662
  %664 = vst [vmem:[%s1 + $0x8c] sm:$0x7] %v663
  %665 = vst.msk [vmem:[%s1 + $0x90] sm:$0xf] %vm589, %v573
  %v666 = vld [vmem:[%s1 + $0x94] sm:$0x7]
  %v667 = vsel %vm593, %v574, %v666
  %668 = vst [vmem:[%s1 + $0x94] sm:$0x7] %v667
  %669 = vst.msk [vmem:[%s1 + $0x98] sm:$0xf] %vm589, %v575
  %v670 = vld [vmem:[%s1 + $0x9c] sm:$0x7]
  %v671 = vsel %vm593, %v576, %v670
  %672 = vst [vmem:[%s1 + $0x9c] sm:$0x7] %v671
  %673 = vst.msk [vmem:[%s1 + $0xa0] sm:$0xf] %vm589, %v577
  %v674 = vld [vmem:[%s1 + $0xa4] sm:$0x7]
  %v675 = vsel %vm593, %v578, %v674
  %676 = vst [vmem:[%s1 + $0xa4] sm:$0x7] %v675
  %677 = vst.msk [vmem:[%s1 + $0xa8] sm:$0xf] %vm589, %v579
  %v678 = vld [vmem:[%s1 + $0xac] sm:$0x7]
  %v679 = vsel %vm593, %v580, %v678
  %680 = vst [vmem:[%s1 + $0xac] sm:$0x7] %v679
  %681 = vst.msk [vmem:[%s1 + $0xb0] sm:$0xf] %vm589, %v581
  %v682 = vld [vmem:[%s1 + $0xb4] sm:$0x7]
  %v683 = vsel %vm593, %v582, %v682
  %684 = vst [vmem:[%s1 + $0xb4] sm:$0x7] %v683
  %685 = vst.msk [vmem:[%s1 + $0xb8] sm:$0xf] %vm589, %v583
  %v686 = vld [vmem:[%s1 + $0xbc] sm:$0x7]
  %v687 = vsel %vm593, %v584, %v686
  %688 = vst [vmem:[%s1 + $0xbc] sm:$0x7] %v687
  %689 = vst.msk [vmem:[%s1 + $0xc0] sm:$0xf] %vm589, %v585
  %v690 = vld [vmem:[%s1 + $0xc4] sm:$0x7]
  %v691 = vsel %vm593, %v586, %v690
  %692 = vst [vmem:[%s1 + $0xc4] sm:$0x7] %v691
  %693 = vst.msk [vmem:[%s1 + $0xc8] sm:$0xf] %vm589, %v587
  %v694 = vld [vmem:[%s1 + $0xcc] sm:$0x7]
  %v695 = vsel %vm593, %v588, %v694
  %696 = vst [vmem:[%s1 + $0xcc] sm:$0x7] %v695
  // Predicated region
  $region6: #{sample_convnet_forward.6} parent=0 // pred_check
    _
  $region7: #{sample_convnet_forward.6} parent=0 // pred_check_branch
    %698 = sbr.rel (0) target = $region9
  $region8: #{sample_convnet_forward.6} parent=0 // pred_region
    _
  $region9: #{sample_convnet_forward.6} parent=0 // pred_fallthru
    _
  // Predicated region
  $region10: #{sample_convnet_forward.6} parent=0 // pred_check
    _
  $region11: #{sample_convnet_forward.6} parent=0 // pred_check_branch
    %700 = sbr.rel (0) target = $region13
  $region12: #{sample_convnet_forward.6} parent=0 // pred_region
    _
  $region13: #{sample_convnet_forward.6} parent=0 // pred_fallthru
    _

// kernel: sample_convnet_forward.7
$region0: #{sample_convnet_forward.7}
  #allocation0 [shape = 'u32[]', space=smem, size = 0x4, offset = 0x4, fixed_abs, tag = 'smem constant byte address 0x4 - core index']
  #allocation1 [shape = 'u32[72,128]{1,0:T(1,128)}', space=vmem, size = 0x9000, scoped, tag = 'internal scratch']
  %s0 = inlined_call_operand.vmem [shape: bf16[50,256], index: 0, kind: input, shape index: {}]
  %s1 = inlined_call_operand.vmem [shape: bf16[256,32], index: 1, kind: input, shape index: {}]
  %s2 = inlined_call_operand.vmem [shape: f32[1,32], index: 2, kind: input, shape index: {}]
  %s3 = inlined_call_operand.vmem [shape: bf16[50,32], index: 3, kind: output, shape index: {}]
  %s4 = sld [smem:[#allocation0]]
  $region22: #{sample_convnet_forward.7} parent=0
    _
  %s6 = ssub.s32 1, %s4
  %s7 = scalar_select 0, %s6, %s4
  // Predicated region
  $region2: #{sample_convnet_forward.7} parent=0 // pred_check
    _
  $region3: #{sample_convnet_forward.7} parent=0 // pred_check_branch
    %9 = sbr.rel (0) target = $region5
  $region4: #{sample_convnet_forward.7} parent=0 // pred_region
    _
  $region5: #{sample_convnet_forward.7} parent=0 // pred_fallthru
    _
  // Predicated region
  $region6: #{sample_convnet_forward.7} parent=0 // pred_check
    _
  $region7: #{sample_convnet_forward.7} parent=0 // pred_check_branch
    %11 = sbr.rel (0) target = $region9
  $region8: #{sample_convnet_forward.7} parent=0 // pred_region
    _
  $region9: #{sample_convnet_forward.7} parent=0 // pred_fallthru
    _
  // Predicated region
  $region10: #{sample_convnet_forward.7} parent=0 // pred_check
    _
  $region11: #{sample_convnet_forward.7} parent=0 // pred_check_branch
    %13 = sbr.rel (0) target = $region13
  $region12: #{sample_convnet_forward.7} parent=0 // pred_region
    _
  $region13: #{sample_convnet_forward.7} parent=0 // pred_fallthru
    _
  %v14 = vld [vmem:[%s0] sm:$0xff]
  %v15 = vld [vmem:[%s0 + $0x8] sm:$0xff]
  %v16 = vld [vmem:[%s0 + $0x10] sm:$0xff]
  %v17 = vld [vmem:[%s0 + $0x18] sm:$0xff]
  %v18 = vld [vmem:[%s0 + $0x20] sm:$0xff]
  %v19 = vld [vmem:[%s0 + $0x28] sm:$0xff]
  %v20 = vld [vmem:[%s0 + $0x30] sm:$0x11]
  %v21 = vld [vmem:[%s1] sm:$0xf]
  %v22 = vld [vmem:[%s1 + $0x4] sm:$0xf]
  %v23 = vld [vmem:[%s1 + $0x8] sm:$0xf]
  %v24 = vld [vmem:[%s1 + $0xc] sm:$0xf]
  %v25 = vld [vmem:[%s1 + $0x10] sm:$0xf]
  %v26 = vld [vmem:[%s1 + $0x14] sm:$0xf]
  %v27 = vld [vmem:[%s1 + $0x18] sm:$0xf]
  %v28 = vld [vmem:[%s1 + $0x1c] sm:$0xf]
  %v29 = vld [vmem:[%s1 + $0x20] sm:$0xf]
  %v30 = vld [vmem:[%s1 + $0x24] sm:$0xf]
  %v31 = vld [vmem:[%s1 + $0x28] sm:$0xf]
  %v32 = vld [vmem:[%s1 + $0x2c] sm:$0xf]
  %v33 = vld [vmem:[%s1 + $0x30] sm:$0xf]
  %v34 = vld [vmem:[%s1 + $0x34] sm:$0xf]
  %v35 = vld [vmem:[%s1 + $0x38] sm:$0xf]
  %v36 = vld [vmem:[%s1 + $0x3c] sm:$0xf]
  %v37 = vld [vmem:[%s1 + $0x40] sm:$0xf]
  %v38 = vld [vmem:[%s1 + $0x44] sm:$0xf]
  %v39 = vld [vmem:[%s1 + $0x48] sm:$0xf]
  %v40 = vld [vmem:[%s1 + $0x4c] sm:$0xf]
  %v41 = vld [vmem:[%s1 + $0x50] sm:$0xf]
  %v42 = vld [vmem:[%s1 + $0x54] sm:$0xf]
  %v43 = vld [vmem:[%s1 + $0x58] sm:$0xf]
  %v44 = vld [vmem:[%s1 + $0x5c] sm:$0xf]
  %v45 = vld [vmem:[%s1 + $0x60] sm:$0xf]
  %v46 = vld [vmem:[%s1 + $0x64] sm:$0xf]
  %v47 = vld [vmem:[%s1 + $0x68] sm:$0xf]
  %v48 = vld [vmem:[%s1 + $0x6c] sm:$0xf]
  %v49 = vld [vmem:[%s1 + $0x70] sm:$0xf]
  %v50 = vld [vmem:[%s1 + $0x74] sm:$0xf]
  %v51 = vld [vmem:[%s1 + $0x78] sm:$0xf]
  %v52 = vld [vmem:[%s1 + $0x7c] sm:$0xf]
  %v53 = vld [vmem:[%s2] sm:$0x1]
  %v55 = vperm.slane %v53, 0
  %v64 = vunpack.c.l.b16 %v14
  %v65 = vunpack.c.h.b16 %v14
  %v66 = vunpack.c.l.b16 %v15
  %v67 = vunpack.c.h.b16 %v15
  %v68 = vunpack.c.l.b16 %v16
  %v69 = vunpack.c.h.b16 %v16
  %v70 = vunpack.c.l.b16 %v17
  %v71 = vunpack.c.h.b16 %v17
  %v72 = vunpack.c.l.b16 %v18
  %v73 = vunpack.c.h.b16 %v18
  %v74 = vunpack.c.l.b16 %v19
  %v75 = vunpack.c.h.b16 %v19
  %v76 = vunpack.c.l.b16 %v20
  %v77 = vunpack.c.h.b16 %v20
  %v78 = vpack.c.b16 %v66, %v64
  %v79 = vpack.c.b16 %v67, %v65
  %v80 = vpack.c.b16 %v70, %v68
  %v81 = vpack.c.b16 %v71, %v69
  %v82 = vpack.c.b16 %v74, %v72
  %v83 = vpack.c.b16 %v75, %v73
  %v84 = vpack.c.b16 %v76, %v76
  %v85 = vpack.c.b16 %v77, %v77
  %v126 = vunpack.c.l.b16 %v21
  %v127 = vunpack.c.l.b16 %v22
  %v128 = vunpack.c.l.b16 %v23
  %v129 = vunpack.c.l.b16 %v24
  %v130 = vunpack.c.l.b16 %v25
  %v131 = vunpack.c.l.b16 %v26
  %v132 = vunpack.c.l.b16 %v27
  %v133 = vunpack.c.l.b16 %v28
  %v134 = vunpack.c.l.b16 %v29
  %v135 = vunpack.c.l.b16 %v30
  %v136 = vunpack.c.l.b16 %v31
  %v137 = vunpack.c.l.b16 %v32
  %v138 = vunpack.c.l.b16 %v33
  %v139 = vunpack.c.l.b16 %v34
  %v140 = vunpack.c.l.b16 %v35
  %v141 = vunpack.c.l.b16 %v36
  %v142 = vunpack.c.l.b16 %v37
  %v143 = vunpack.c.l.b16 %v38
  %v144 = vunpack.c.l.b16 %v39
  %v145 = vunpack.c.l.b16 %v40
  %v146 = vunpack.c.l.b16 %v41
  %v147 = vunpack.c.l.b16 %v42
  %v148 = vunpack.c.l.b16 %v43
  %v149 = vunpack.c.l.b16 %v44
  %v150 = vunpack.c.l.b16 %v45
  %v151 = vunpack.c.l.b16 %v46
  %v152 = vunpack.c.l.b16 %v47
  %v153 = vunpack.c.l.b16 %v48
  %v154 = vunpack.c.l.b16 %v49
  %v155 = vunpack.c.l.b16 %v50
  %v156 = vunpack.c.l.b16 %v51
  %v157 = vunpack.c.l.b16 %v52
  %v158 = vpack.c.b16 %v127, %v126
  %v159 = vpack.c.b16 %v129, %v128
  %v160 = vpack.c.b16 %v131, %v130
  %v161 = vpack.c.b16 %v133, %v132
  %v162 = vpack.c.b16 %v135, %v134
  %v163 = vpack.c.b16 %v137, %v136
  %v164 = vpack.c.b16 %v139, %v138
  %v165 = vpack.c.b16 %v141, %v140
  %v166 = vpack.c.b16 %v143, %v142
  %v167 = vpack.c.b16 %v145, %v144
  %v168 = vpack.c.b16 %v147, %v146
  %v169 = vpack.c.b16 %v149, %v148
  %v170 = vpack.c.b16 %v151, %v150
  %v171 = vpack.c.b16 %v153, %v152
  %v172 = vpack.c.b16 %v155, %v154
  %v173 = vpack.c.b16 %v157, %v156
  %190 = vmatpush.bf16.msra.mxu0 %v165
  %191 = vmatpush.bf16.msra.mxu0 %v164
  %192 = vmatpush.bf16.msra.mxu0 %v163
  %193 = vmatpush.bf16.msra.mxu0 %v162
  %194 = vmatpush.bf16.msra.mxu0 %v161
  %195 = vmatpush.bf16.msra.mxu0 %v160
  %196 = vmatpush.bf16.msra.mxu0 %v159
  %197 = vmatpush.bf16.msra.mxu0 %v158
  %198 = vmatmul.bf16.gmra.mxu0 %v78
  %v199 = vpop.f32.mrf.mxu0
  %v200 = vadd.f32 %v55, %v199
  %v201 = vpop.f32.mrf.mxu0
  %v202 = vadd.f32 %v55, %v201
  %203 = vmatmul.bf16.gmra.mxu0 %v80
  %v204 = vpop.f32.mrf.mxu0
  %v205 = vadd.f32 %v55, %v204
  %v206 = vpop.f32.mrf.mxu0
  %v207 = vadd.f32 %v55, %v206
  %208 = vmatmul.bf16.gmra.mxu0 %v82
  %v209 = vpop.f32.mrf.mxu0
  %v210 = vadd.f32 %v55, %v209
  %v211 = vpop.f32.mrf.mxu0
  %v212 = vadd.f32 %v55, %v211
  %213 = vmatmul.bf16.gmra.mxu0 %v84
  %v214 = vpop.f32.mrf.mxu0
  %v215 = vadd.f32 %v55, %v214
  %v216 = vpop.f32.mrf.mxu0
  %217 = vdwg.mxu0
  %218 = vmatpush.bf16.msra.mxu0 %v173
  %219 = vmatpush.bf16.msra.mxu0 %v172
  %220 = vmatpush.bf16.msra.mxu0 %v171
  %221 = vmatpush.bf16.msra.mxu0 %v170
  %222 = vmatpush.bf16.msra.mxu0 %v169
  %223 = vmatpush.bf16.msra.mxu0 %v168
  %224 = vmatpush.bf16.msra.mxu0 %v167
  %225 = vmatpush.bf16.msra.mxu0 %v166
  %226 = vmatmul.bf16.gmra.mxu0 %v79
  %v227 = vpop.f32.mrf.mxu0
  %v228 = vadd.f32 %v200, %v227
  %v229 = vpop.f32.mrf.mxu0
  %v230 = vadd.f32 %v202, %v229
  %231 = vmatmul.bf16.gmra.mxu0 %v81
  %v232 = vpop.f32.mrf.mxu0
  %v233 = vadd.f32 %v205, %v232
  %v234 = vpop.f32.mrf.mxu0
  %v235 = vadd.f32 %v207, %v234
  %236 = vmatmul.bf16.gmra.mxu0 %v83
  %v237 = vpop.f32.mrf.mxu0
  %v238 = vadd.f32 %v210, %v237
  %v239 = vpop.f32.mrf.mxu0
  %v240 = vadd.f32 %v212, %v239
  %241 = vmatmul.bf16.gmra.mxu0 %v85
  %v242 = vpop.f32.mrf.mxu0
  %v243 = vadd.f32 %v215, %v242
  %v244 = vpop.f32.mrf.mxu0
  %245 = vdwg.mxu0
  %v246 = vmax.f32 %v228, 0.0
  %v247 = vmax.f32 %v230, 0.0
  %v248 = vmax.f32 %v233, 0.0
  %v249 = vmax.f32 %v235, 0.0
  %v250 = vmax.f32 %v238, 0.0
  %v251 = vmax.f32 %v240, 0.0
  %v252 = vmax.f32 %v243, 0.0
  %v253 = vpack.c.bf16 %v246, %v246
  %v254 = vpack.c.bf16 %v247, %v247
  %v255 = vpack.c.bf16 %v248, %v248
  %v256 = vpack.c.bf16 %v249, %v249
  %v257 = vpack.c.bf16 %v250, %v250
  %v258 = vpack.c.bf16 %v251, %v251
  %v259 = vpack.c.bf16 %v252, %v252
  %vm260 = vcmask 257024
  %261 = vst.msk [vmem:[%s3] sm:$0xf] %vm260, %v253
  %262 = vst.msk [vmem:[%s3 + $0x4] sm:$0xf] %vm260, %v254
  %263 = vst.msk [vmem:[%s3 + $0x8] sm:$0xf] %vm260, %v255
  %264 = vst.msk [vmem:[%s3 + $0xc] sm:$0xf] %vm260, %v256
  %265 = vst.msk [vmem:[%s3 + $0x10] sm:$0xf] %vm260, %v257
  %266 = vst.msk [vmem:[%s3 + $0x14] sm:$0xf] %vm260, %v258
  %vm267 = vcmask 253952
  %268 = vst.msk [vmem:[%s3 + $0x18] sm:$0x1] %vm267, %v259
  // Predicated region
  $region14: #{sample_convnet_forward.7} parent=0 // pred_check
    _
  $region15: #{sample_convnet_forward.7} parent=0 // pred_check_branch
    %270 = sbr.rel (0) target = $region17
  $region16: #{sample_convnet_forward.7} parent=0 // pred_region
    _
  $region17: #{sample_convnet_forward.7} parent=0 // pred_fallthru
    _
  // Predicated region
  $region18: #{sample_convnet_forward.7} parent=0 // pred_check
    _
  $region19: #{sample_convnet_forward.7} parent=0 // pred_check_branch
    %272 = sbr.rel (0) target = $region21
  $region20: #{sample_convnet_forward.7} parent=0 // pred_region
    _
  $region21: #{sample_convnet_forward.7} parent=0 // pred_fallthru
    _

// kernel: sample_convnet_forward.8
$region0: #{sample_convnet_forward.8}
  #allocation0 [shape = 'u32[]', space=smem, size = 0x4, offset = 0x4, fixed_abs, tag = 'smem constant byte address 0x4 - core index']
  #allocation1 [shape = 'u32[72,128]{1,0:T(1,128)}', space=vmem, size = 0x9000, scoped, tag = 'internal scratch']
  %s0 = inlined_call_operand.vmem [shape: bf16[2,5,5,32], index: 0, kind: input, shape index: {}]
  %s1 = inlined_call_operand.vmem [shape: bf16[2,4,4,32], index: 1, kind: output, shape index: {}]
  %s2 = sld [smem:[#allocation0]]
  $region14: #{sample_convnet_forward.8} parent=0
    _
  %s4 = ssub.s32 1, %s2
  %s5 = scalar_select 0, %s4, %s2
  // Predicated region
  $region2: #{sample_convnet_forward.8} parent=0 // pred_check
    _
  $region3: #{sample_convnet_forward.8} parent=0 // pred_check_branch
    %7 = sbr.rel (0) target = $region5
  $region4: #{sample_convnet_forward.8} parent=0 // pred_region
    _
  $region5: #{sample_convnet_forward.8} parent=0 // pred_fallthru
    _
  %v8 = vld [vmem:[%s0] sm:$0x7]
  %v9 = vld [vmem:[%s0 + $0x4] sm:$0x7]
  %v10 = vld [vmem:[%s0 + $0x8] sm:$0x7]
  %v11 = vld [vmem:[%s0 + $0xc] sm:$0x7]
  %v12 = vld [vmem:[%s0 + $0x10] sm:$0x7]
  %v13 = vld [vmem:[%s0 + $0x14] sm:$0x7]
  %v14 = vld [vmem:[%s0 + $0x18] sm:$0x7]
  %v15 = vld [vmem:[%s0 + $0x1c] sm:$0x7]
  %v16 = vld [vmem:[%s0 + $0x20] sm:$0x7]
  %v17 = vld [vmem:[%s0 + $0x24] sm:$0x7]
  %v18 = vunpack.c.l.bf16 %v8
  %v19 = vunpack.c.l.bf16 %v9
  %v20 = vunpack.c.l.bf16 %v10
  %v21 = vunpack.c.l.bf16 %v11
  %v22 = vunpack.c.l.bf16 %v13
  %v23 = vunpack.c.l.bf16 %v14
  %v24 = vunpack.c.l.bf16 %v15
  %v25 = vunpack.c.l.bf16 %v16
  %v34 = vrot.slane %v18, 1
  %v35 = vrot.slane %v19, 1
  %v36 = vrot.slane %v20, 1
  %v37 = vrot.slane %v21, 1
  %v38 = vrot.slane %v22, 1
  %v39 = vrot.slane %v23, 1
  %v40 = vrot.slane %v24, 1
  %v41 = vrot.slane %v25, 1
  %v50 = vmax.f32 %v18, %v34
  %v51 = vmax.f32 %v19, %v35
  %v52 = vmax.f32 %v20, %v36
  %v53 = vmax.f32 %v21, %v37
  %v54 = vmax.f32 %v22, %v38
  %v55 = vmax.f32 %v23, %v39
  %v56 = vmax.f32 %v24, %v40
  %v57 = vmax.f32 %v25, %v41
  %v58 = vpack.c.bf16 %v50, %v50
  %v59 = vpack.c.bf16 %v51, %v51
  %v60 = vpack.c.bf16 %v52, %v52
  %v61 = vpack.c.bf16 %v53, %v53
  %v62 = vpack.c.bf16 %v54, %v54
  %v63 = vpack.c.bf16 %v55, %v55
  %v64 = vpack.c.bf16 %v56, %v56
  %v65 = vpack.c.bf16 %v57, %v57
  %v66 = vunpack.c.l.bf16 %v12
  %v67 = vunpack.c.l.bf16 %v17
  %v70 = vrot.slane %v66, 1
  %v71 = vrot.slane %v67, 1
  %v74 = vmax.f32 %v66, %v70
  %v75 = vmax.f32 %v67, %v71
  %v76 = vpack.c.bf16 %v74, %v74
  %v77 = vpack.c.bf16 %v75, %v75
  %v78 = vunpack.c.l.bf16 %v58
  %v79 = vunpack.c.l.bf16 %v59
  %v80 = vunpack.c.l.bf16 %v60
  %v81 = vunpack.c.l.bf16 %v61
  %v82 = vunpack.c.l.bf16 %v62
  %v83 = vunpack.c.l.bf16 %v63
  %v84 = vunpack.c.l.bf16 %v64
  %v85 = vunpack.c.l.bf16 %v65
  %v86 = vunpack.c.l.bf16 %v76
  %v87 = vunpack.c.l.bf16 %v77
  %v88 = vmax.f32 %v78, %v79
  %v89 = vmax.f32 %v79, %v80
  %v90 = vmax.f32 %v80, %v81
  %v91 = vmax.f32 %v81, %v86
  %v92 = vmax.f32 %v82, %v83
  %v93 = vmax.f32 %v83, %v84
  %v94 = vmax.f32 %v84, %v85
  %v95 = vmax.f32 %v85, %v87
  %v96 = vpack.c.bf16 %v88, %v88
  %v97 = vpack.c.bf16 %v89, %v89
  %v98 = vpack.c.bf16 %v90, %v90
  %v99 = vpack.c.bf16 %v91, %v91
  %v100 = vpack.c.bf16 %v92, %v92
  %v101 = vpack.c.bf16 %v93, %v93
  %v102 = vpack.c.bf16 %v94, %v94
  %v103 = vpack.c.bf16 %v95, %v95
  %vm104 = vcmask 254976
  %105 = vst.msk [vmem:[%s1] sm:$0x3] %vm104, %v96
  %106 = vst.msk [vmem:[%s1 + $0x2] sm:$0x3] %vm104, %v97
  %107 = vst.msk [vmem:[%s1 + $0x4] sm:$0x3] %vm104, %v98
  %108 = vst.msk [vmem:[%s1 + $0x6] sm:$0x3] %vm104, %v99
  %109 = vst.msk [vmem:[%s1 + $0x8] sm:$0x3] %vm104, %v100
  %110 = vst.msk [vmem:[%s1 + $0xa] sm:$0x3] %vm104, %v101
  %111 = vst.msk [vmem:[%s1 + $0xc] sm:$0x3] %vm104, %v102
  %112 = vst.msk [vmem:[%s1 + $0xe] sm:$0x3] %vm104, %v103
  // Predicated region
  $region6: #{sample_convnet_forward.8} parent=0 // pred_check
    _
  $region7: #{sample_convnet_forward.8} parent=0 // pred_check_branch
    %114 = sbr.rel (0) target = $region9
  $region8: #{sample_convnet_forward.8} parent=0 // pred_region
    _
  $region9: #{sample_convnet_forward.8} parent=0 // pred_fallthru
    _
  // Predicated region
  $region10: #{sample_convnet_forward.8} parent=0 // pred_check
    _
  $region11: #{sample_convnet_forward.8} parent=0 // pred_check_branch
    %116 = sbr.rel (0) target = $region13
  $region12: #{sample_convnet_forward.8} parent=0 // pred_region
    _
  $region13: #{sample_convnet_forward.8} parent=0 // pred_fallthru
    _

// kernel: sample_convnet_forward.9
$region0: #{sample_convnet_forward.9}
  #allocation0 [shape = 'u32[]', space=smem, size = 0x4, offset = 0x4, fixed_abs, tag = 'smem constant byte address 0x4 - core index']
  #allocation1 [shape = 'u32[72,128]{1,0:T(1,128)}', space=vmem, size = 0x9000, scoped, tag = 'internal scratch']
  %s0 = inlined_call_operand.vmem [shape: bf16[2,512], index: 0, kind: input, shape index: {}]
  %s1 = inlined_call_operand.vmem [shape: bf16[512,32], index: 1, kind: input, shape index: {}]
  %s2 = inlined_call_operand.vmem [shape: f32[1,32], index: 2, kind: input, shape index: {}]
  %s3 = inlined_call_operand.vmem [shape: bf16[32,10], index: 3, kind: input, shape index: {}]
  %s4 = inlined_call_operand.vmem [shape: f32[1,10], index: 4, kind: input, shape index: {}]
  %s5 = inlined_call_operand.hbm [shape: f32[2,10], index: 5, kind: output, shape index: {}]
  %s6 = sld [smem:[#allocation0]]
  $region30: #{sample_convnet_forward.9} parent=0
    _
  %s8 = ssub.s32 1, %s6
  %s9 = scalar_select 0, %s8, %s6
  $region1: #{sample_convnet_forward.9} parent=0
    #allocation2 [shape = 'u8[1024]{0}', space=vmem, size = 0x400, scoped, tag = 'output window, operand 0, single buffered']
    #allocation3 [shape = 's32[1]{0}', space=sflag, size = 0x4, scoped, tag = 'scoped memory for sample_convnet_forward.9']
    %10 = vsyncpa [#allocation3], 0
    // Predicated region
    $region2: #{sample_convnet_forward.9} parent=1 // pred_check
      _
    $region3: #{sample_convnet_forward.9} parent=1 // pred_check_branch
      %12 = sbr.rel (0) target = $region5
    $region4: #{sample_convnet_forward.9} parent=1 // pred_region
      _
    $region5: #{sample_convnet_forward.9} parent=1 // pred_fallthru
      _
    // Predicated region
    $region6: #{sample_convnet_forward.9} parent=1 // pred_check
      _
    $region7: #{sample_convnet_forward.9} parent=1 // pred_check_branch
      %14 = sbr.rel (0) target = $region9
    $region8: #{sample_convnet_forward.9} parent=1 // pred_region
      _
    $region9: #{sample_convnet_forward.9} parent=1 // pred_fallthru
      _
    // Predicated region
    $region10: #{sample_convnet_forward.9} parent=1 // pred_check
      _
    $region11: #{sample_convnet_forward.9} parent=1 // pred_check_branch
      %16 = sbr.rel (0) target = $region13
    $region12: #{sample_convnet_forward.9} parent=1 // pred_region
      _
    $region13: #{sample_convnet_forward.9} parent=1 // pred_fallthru
      _
    // Predicated region
    $region14: #{sample_convnet_forward.9} parent=1 // pred_check
      _
    $region15: #{sample_convnet_forward.9} parent=1 // pred_check_branch
      %18 = sbr.rel (0) target = $region17
    $region16: #{sample_convnet_forward.9} parent=1 // pred_region
      _
    $region17: #{sample_convnet_forward.9} parent=1 // pred_fallthru
      _
    // Predicated region
    $region18: #{sample_convnet_forward.9} parent=1 // pred_check
      _
    $region19: #{sample_convnet_forward.9} parent=1 // pred_check_branch
      %20 = sbr.rel (0) target = $region21
    $region20: #{sample_convnet_forward.9} parent=1 // pred_region
      _
    $region21: #{sample_convnet_forward.9} parent=1 // pred_fallthru
      _
    %v22 = vld [vmem:[%s0] sm:$0xf]
    %v23 = vld [vmem:[%s1] sm:$0xf]
    %v24 = vld [vmem:[%s1 + $0x4] sm:$0xf]
    %v25 = vld [vmem:[%s1 + $0x8] sm:$0xf]
    %v26 = vld [vmem:[%s1 + $0xc] sm:$0xf]
    %v27 = vld [vmem:[%s1 + $0x10] sm:$0xf]
    %v28 = vld [vmem:[%s1 + $0x14] sm:$0xf]
    %v29 = vld [vmem:[%s1 + $0x18] sm:$0xf]
    %v30 = vld [vmem:[%s1 + $0x1c] sm:$0xf]
    %v31 = vld [vmem:[%s1 + $0x20] sm:$0xf]
    %v32 = vld [vmem:[%s1 + $0x24] sm:$0xf]
    %v33 = vld [vmem:[%s1 + $0x28] sm:$0xf]
    %v34 = vld [vmem:[%s1 + $0x2c] sm:$0xf]
    %v35 = vld [vmem:[%s1 + $0x30] sm:$0xf]
    %v36 = vld [vmem:[%s1 + $0x34] sm:$0xf]
    %v37 = vld [vmem:[%s1 + $0x38] sm:$0xf]
    %v38 = vld [vmem:[%s1 + $0x3c] sm:$0xf]
    %v39 = vld [vmem:[%s1 + $0x40] sm:$0xf]
    %v40 = vld [vmem:[%s1 + $0x44] sm:$0xf]
    %v41 = vld [vmem:[%s1 + $0x48] sm:$0xf]
    %v42 = vld [vmem:[%s1 + $0x4c] sm:$0xf]
    %v43 = vld [vmem:[%s1 + $0x50] sm:$0xf]
    %v44 = vld [vmem:[%s1 + $0x54] sm:$0xf]
    %v45 = vld [vmem:[%s1 + $0x58] sm:$0xf]
    %v46 = vld [vmem:[%s1 + $0x5c] sm:$0xf]
    %v47 = vld [vmem:[%s1 + $0x60] sm:$0xf]
    %v48 = vld [vmem:[%s1 + $0x64] sm:$0xf]
    %v49 = vld [vmem:[%s1 + $0x68] sm:$0xf]
    %v50 = vld [vmem:[%s1 + $0x6c] sm:$0xf]
    %v51 = vld [vmem:[%s1 + $0x70] sm:$0xf]
    %v52 = vld [vmem:[%s1 + $0x74] sm:$0xf]
    %v53 = vld [vmem:[%s1 + $0x78] sm:$0xf]
    %v54 = vld [vmem:[%s1 + $0x7c] sm:$0xf]
    %v55 = vld [vmem:[%s1 + $0x80] sm:$0xf]
    %v56 = vld [vmem:[%s1 + $0x84] sm:$0xf]
    %v57 = vld [vmem:[%s1 + $0x88] sm:$0xf]
    %v58 = vld [vmem:[%s1 + $0x8c] sm:$0xf]
    %v59 = vld [vmem:[%s1 + $0x90] sm:$0xf]
    %v60 = vld [vmem:[%s1 + $0x94] sm:$0xf]
    %v61 = vld [vmem:[%s1 + $0x98] sm:$0xf]
    %v62 = vld [vmem:[%s1 + $0x9c] sm:$0xf]
    %v63 = vld [vmem:[%s1 + $0xa0] sm:$0xf]
    %v64 = vld [vmem:[%s1 + $0xa4] sm:$0xf]
    %v65 = vld [vmem:[%s1 + $0xa8] sm:$0xf]
    %v66 = vld [vmem:[%s1 + $0xac] sm:$0xf]
    %v67 = vld [vmem:[%s1 + $0xb0] sm:$0xf]
    %v68 = vld [vmem:[%s1 + $0xb4] sm:$0xf]
    %v69 = vld [vmem:[%s1 + $0xb8] sm:$0xf]
    %v70 = vld [vmem:[%s1 + $0xbc] sm:$0xf]
    %v71 = vld [vmem:[%s1 + $0xc0] sm:$0xf]
    %v72 = vld [vmem:[%s1 + $0xc4] sm:$0xf]
    %v73 = vld [vmem:[%s1 + $0xc8] sm:$0xf]
    %v74 = vld [vmem:[%s1 + $0xcc] sm:$0xf]
    %v75 = vld [vmem:[%s1 + $0xd0] sm:$0xf]
    %v76 = vld [vmem:[%s1 + $0xd4] sm:$0xf]
    %v77 = vld [vmem:[%s1 + $0xd8] sm:$0xf]
    %v78 = vld [vmem:[%s1 + $0xdc] sm:$0xf]
    %v79 = vld [vmem:[%s1 + $0xe0] sm:$0xf]
    %v80 = vld [vmem:[%s1 + $0xe4] sm:$0xf]
    %v81 = vld [vmem:[%s1 + $0xe8] sm:$0xf]
    %v82 = vld [vmem:[%s1 + $0xec] sm:$0xf]
    %v83 = vld [vmem:[%s1 + $0xf0] sm:$0xf]
    %v84 = vld [vmem:[%s1 + $0xf4] sm:$0xf]
    %v85 = vld [vmem:[%s1 + $0xf8] sm:$0xf]
    %v86 = vld [vmem:[%s1 + $0xfc] sm:$0xf]
    %v87 = vld [vmem:[%s2] sm:$0x1]
    %v89 = vperm.slane %v87, 0
    %92 = vst [vmem:[#allocation1] ss:$9 sm:$0xff] %v22
    %v93 = vld [vmem:[#allocation1] sm:$0xff]
    %v94 = vld [vmem:[#allocation1 + $0x9] sm:$0xff]
    %v95 = vld [vmem:[#allocation1 + $0x12] sm:$0xff]
    %v96 = vld [vmem:[#allocation1 + $0x1b] sm:$0xff]
    %v165 = vunpack.c.l.b16 %v23
    %v166 = vunpack.c.l.b16 %v24
    %v167 = vunpack.c.l.b16 %v25
    %v168 = vunpack.c.l.b16 %v26
    %v169 = vunpack.c.l.b16 %v27
    %v170 = vunpack.c.l.b16 %v28
    %v171 = vunpack.c.l.b16 %v29
    %v172 = vunpack.c.l.b16 %v30
    %v173 = vunpack.c.l.b16 %v31
    %v174 = vunpack.c.l.b16 %v32
    %v175 = vunpack.c.l.b16 %v33
    %v176 = vunpack.c.l.b16 %v34
    %v177 = vunpack.c.l.b16 %v35
    %v178 = vunpack.c.l.b16 %v36
    %v179 = vunpack.c.l.b16 %v37
    %v180 = vunpack.c.l.b16 %v38
    %v181 = vunpack.c.l.b16 %v39
    %v182 = vunpack.c.l.b16 %v40
    %v183 = vunpack.c.l.b16 %v41
    %v184 = vunpack.c.l.b16 %v42
    %v185 = vunpack.c.l.b16 %v43
    %v186 = vunpack.c.l.b16 %v44
    %v187 = vunpack.c.l.b16 %v45
    %v188 = vunpack.c.l.b16 %v46
    %v189 = vunpack.c.l.b16 %v47
    %v190 = vunpack.c.l.b16 %v48
    %v191 = vunpack.c.l.b16 %v49
    %v192 = vunpack.c.l.b16 %v50
    %v193 = vunpack.c.l.b16 %v51
    %v194 = vunpack.c.l.b16 %v52
    %v195 = vunpack.c.l.b16 %v53
    %v196 = vunpack.c.l.b16 %v54
    %v197 = vunpack.c.l.b16 %v55
    %v198 = vunpack.c.l.b16 %v56
    %v199 = vunpack.c.l.b16 %v57
    %v200 = vunpack.c.l.b16 %v58
    %v201 = vunpack.c.l.b16 %v59
    %v202 = vunpack.c.l.b16 %v60
    %v203 = vunpack.c.l.b16 %v61
    %v204 = vunpack.c.l.b16 %v62
    %v205 = vunpack.c.l.b16 %v63
    %v206 = vunpack.c.l.b16 %v64
    %v207 = vunpack.c.l.b16 %v65
    %v208 = vunpack.c.l.b16 %v66
    %v209 = vunpack.c.l.b16 %v67
    %v210 = vunpack.c.l.b16 %v68
    %v211 = vunpack.c.l.b16 %v69
    %v212 = vunpack.c.l.b16 %v70
    %v213 = vunpack.c.l.b16 %v71
    %v214 = vunpack.c.l.b16 %v72
    %v215 = vunpack.c.l.b16 %v73
    %v216 = vunpack.c.l.b16 %v74
    %v217 = vunpack.c.l.b16 %v75
    %v218 = vunpack.c.l.b16 %v76
    %v219 = vunpack.c.l.b16 %v77
    %v220 = vunpack.c.l.b16 %v78
    %v221 = vunpack.c.l.b16 %v79
    %v222 = vunpack.c.l.b16 %v80
    %v223 = vunpack.c.l.b16 %v81
    %v224 = vunpack.c.l.b16 %v82
    %v225 = vunpack.c.l.b16 %v83
    %v226 = vunpack.c.l.b16 %v84
    %v227 = vunpack.c.l.b16 %v85
    %v228 = vunpack.c.l.b16 %v86
    %v229 = vpack.c.b16 %v166, %v165
    %v230 = vpack.c.b16 %v168, %v167
    %v231 = vpack.c.b16 %v170, %v169
    %v232 = vpack.c.b16 %v172, %v171
    %v233 = vpack.c.b16 %v174, %v173
    %v234 = vpack.c.b16 %v176, %v175
    %v235 = vpack.c.b16 %v178, %v177
    %v236 = vpack.c.b16 %v180, %v179
    %v237 = vpack.c.b16 %v182, %v181
    %v238 = vpack.c.b16 %v184, %v183
    %v239 = vpack.c.b16 %v186, %v185
    %v240 = vpack.c.b16 %v188, %v187
    %v241 = vpack.c.b16 %v190, %v189
    %v242 = vpack.c.b16 %v192, %v191
    %v243 = vpack.c.b16 %v194, %v193
    %v244 = vpack.c.b16 %v196, %v195
    %v245 = vpack.c.b16 %v198, %v197
    %v246 = vpack.c.b16 %v200, %v199
    %v247 = vpack.c.b16 %v202, %v201
    %v248 = vpack.c.b16 %v204, %v203
    %v249 = vpack.c.b16 %v206, %v205
    %v250 = vpack.c.b16 %v208, %v207
    %v251 = vpack.c.b16 %v210, %v209
    %v252 = vpack.c.b16 %v212, %v211
    %v253 = vpack.c.b16 %v214, %v213
    %v254 = vpack.c.b16 %v216, %v215
    %v255 = vpack.c.b16 %v218, %v217
    %v256 = vpack.c.b16 %v220, %v219
    %v257 = vpack.c.b16 %v222, %v221
    %v258 = vpack.c.b16 %v224, %v223
    %v259 = vpack.c.b16 %v226, %v225
    %v260 = vpack.c.b16 %v228, %v227
    %293 = vmatpush.bf16.msra.mxu0 %v236
    %294 = vmatpush.bf16.msra.mxu0 %v235
    %295 = vmatpush.bf16.msra.mxu0 %v234
    %296 = vmatpush.bf16.msra.mxu0 %v233
    %297 = vmatpush.bf16.msra.mxu0 %v232
    %298 = vmatpush.bf16.msra.mxu0 %v231
    %299 = vmatpush.bf16.msra.mxu0 %v230
    %300 = vmatpush.bf16.msra.mxu0 %v229
    %301 = vmatmul.bf16.gmra.mxu0 %v93
    %v302 = vpop.f32.mrf.mxu0
    %v303 = vadd.f32 %v89, %v302
    %v304 = vpop.f32.mrf.mxu0
    %305 = vdwg.mxu0
    %306 = vmatpush.bf16.msra.mxu0 %v244
    %307 = vmatpush.bf16.msra.mxu0 %v243
    %308 = vmatpush.bf16.msra.mxu0 %v242
    %309 = vmatpush.bf16.msra.mxu0 %v241
    %310 = vmatpush.bf16.msra.mxu0 %v240
    %311 = vmatpush.bf16.msra.mxu0 %v239
    %312 = vmatpush.bf16.msra.mxu0 %v238
    %313 = vmatpush.bf16.msra.mxu0 %v237
    %314 = vmatmul.bf16.gmra.mxu0 %v94
    %v315 = vpop.f32.mrf.mxu0
    %v316 = vadd.f32 %v303, %v315
    %v317 = vpop.f32.mrf.mxu0
    %318 = vdwg.mxu0
    %319 = vmatpush.bf16.msra.mxu0 %v252
    %320 = vmatpush.bf16.msra.mxu0 %v251
    %321 = vmatpush.bf16.msra.mxu0 %v250
    %322 = vmatpush.bf16.msra.mxu0 %v249
    %323 = vmatpush.bf16.msra.mxu0 %v248
    %324 = vmatpush.bf16.msra.mxu0 %v247
    %325 = vmatpush.bf16.msra.mxu0 %v246
    %326 = vmatpush.bf16.msra.mxu0 %v245
    %327 = vmatmul.bf16.gmra.mxu0 %v95
    %v328 = vpop.f32.mrf.mxu0
    %v329 = vadd.f32 %v316, %v328
    %v330 = vpop.f32.mrf.mxu0
    %331 = vdwg.mxu0
    %332 = vmatpush.bf16.msra.mxu0 %v260
    %333 = vmatpush.bf16.msra.mxu0 %v259
    %334 = vmatpush.bf16.msra.mxu0 %v258
    %335 = vmatpush.bf16.msra.mxu0 %v257
    %336 = vmatpush.bf16.msra.mxu0 %v256
    %337 = vmatpush.bf16.msra.mxu0 %v255
    %338 = vmatpush.bf16.msra.mxu0 %v254
    %339 = vmatpush.bf16.msra.mxu0 %v253
    %340 = vmatmul.bf16.gmra.mxu0 %v96
    %v341 = vpop.f32.mrf.mxu0
    %v342 = vadd.f32 %v329, %v341
    %v343 = vpop.f32.mrf.mxu0
    %344 = vdwg.mxu0
    %v345 = vmax.f32 %v342, 0.0
    %v346 = vpack.c.bf16 %v345, %v345
    %v347 = vld [vmem:[%s3] sm:$0xf]
    %v348 = vld [vmem:[%s3 + $0x4] sm:$0xf]
    %v349 = vld [vmem:[%s3 + $0x8] sm:$0xf]
    %v350 = vld [vmem:[%s3 + $0xc] sm:$0xf]
    %v351 = vld [vmem:[%s4] sm:$0x1]
    %v353 = vperm.slane %v351, 0
    %v359 = vunpack.c.l.b16 %v347
    %v360 = vunpack.c.l.b16 %v348
    %v361 = vunpack.c.l.b16 %v349
    %v362 = vunpack.c.l.b16 %v350
    %v363 = vpack.c.b16 %v360, %v359
    %v364 = vpack.c.b16 %v362, %v361
    %vm367 = vcmask 261120
    %v369 = vsel %vm367, %v346, 0
    %371 = vmatpush.bf16.msra.mxu0 0
    %372 = vmatpush.bf16.msra.mxu0 0
    %373 = vmatpush.bf16.msra.mxu0 0
    %374 = vmatpush.bf16.msra.mxu0 0
    %375 = vmatpush.bf16.msra.mxu0 0
    %376 = vmatpush.bf16.msra.mxu0 0
    %377 = vmatpush.bf16.msra.mxu0 %v364
    %378 = vmatpush.bf16.msra.mxu0 %v363
    %379 = vmatmul.bf16.gmra.mxu0 %v369
    %v380 = vpop.f32.mrf.mxu0
    %v381 = vadd.f32 %v353, %v380
    %v382 = vpop.f32.mrf.mxu0
    %383 = vdwg.mxu0
    %vm384 = vcmask 74752
    %385 = vst.msk [vmem:[#allocation2] sm:$0x3] %vm384, %v381
    // Predicated region
    $region22: #{sample_convnet_forward.9} parent=1 // pred_check
      _
    $region23: #{sample_convnet_forward.9} parent=1 // pred_check_branch
      %387 = sbr.rel (0) target = $region25
    $region24: #{sample_convnet_forward.9} parent=1 // pred_region
      %389 = vsyncadd [#allocation3], 0
      %s391 = sshll.u32 [#allocation2], 4
      %s392 = int_to_ptr.vmem [resolvable:$true] %s391
      %s393 = sshll.u32 %s5, 4
      %s394 = int_to_ptr.hbm [resolvable:$true] %s393
      %396 = dma.vmem_to_hbm [thread:$0]  %s392, 32, %s394, [#allocation3]
    $region25: #{sample_convnet_forward.9} parent=1 // pred_fallthru
      _
    // Predicated region
    $region26: #{sample_convnet_forward.9} parent=1 // pred_check
      _
    $region27: #{sample_convnet_forward.9} parent=1 // pred_check_branch
      %398 = sbr.rel (0) target = $region29
    $region28: #{sample_convnet_forward.9} parent=1 // pred_region
      %400 = dma.done [#allocation3], 32
    $region29: #{sample_convnet_forward.9} parent=1 // pred_fallthru
      _
    %401 = vsyncpa [#allocation3], 1

</llo_original>
